<compile_context>
chip_gen: v5e
topology: v5e:2x2
jax: 0.10.0
libtpu: 0.0.40
codegen_flags: <defaults>
</compile_context>

<pallas_src>
import functools

import jax
import jax.numpy as jnp
from jax.experimental import pallas as pl
from jax.experimental.pallas import tpu as pltpu


def simplevit_kernel(patches_ref, pool_ref, w_embed_ref, b_embed_ref,
                     w_proj_ref, b_proj_ref, w_fc_ref,
                     feat_ref, logit_ref, *, inv_p):
    # patches_ref: [TB*P, D] bf16 -- one batch tile, tokens flattened into rows.
    # pool_ref:    [TB, TB*P] bf16 block-diagonal matrix of exact 1.0 entries (resident).

    # --- patch embedding: one lane-dense bf16 x bf16 MXU matmul, f32 accumulate ---
    tokens = jnp.dot(patches_ref[...], w_embed_ref[...],
                     preferred_element_type=jnp.float32)              # [TB*P, E] f32
    # GELU kept in f32 (tanh approx). On v6e/v7x the EUP has bf16 if it ever becomes
    # the saturating unit; on v5e f32 is the right choice (no bf16 EUP/VPU).
    tokens = jax.nn.gelu(tokens + b_embed_ref[...])
    tokens_bf = tokens.astype(jnp.bfloat16)                           # single-pass MXU below

    # --- mean-pool over the P tokens of each image: resident block-diagonal pool matrix
    #     (hoisted out of the kernel; 1.0 entries are bf16-exact), 1/P applied after in f32.
    pooled = jnp.dot(pool_ref[...], tokens_bf,
                     preferred_element_type=jnp.float32) * inv_p      # [TB, E] f32

    # --- projection to convnet.out_dim (CLIP out_dim = 512) ---
    features = jnp.dot(pooled.astype(jnp.bfloat16), w_proj_ref[...],
                       preferred_element_type=jnp.float32) + b_proj_ref[...]   # [TB, F]
    feat_ref[...] = features

    # --- CosineLinear head: sigma * <f/||f||, w/||w||>.  Weight columns arrive already
    #     L2-normalized, pre-scaled by sigma and cast to bf16; feature rsqrt uses the EUP. ---
    inv_norm = jax.lax.rsqrt(
        jnp.maximum(jnp.sum(features * features, axis=-1, keepdims=True), 1e-12))
    logit_ref[...] = jnp.dot((features * inv_norm).astype(jnp.bfloat16), w_fc_ref[...],
                             preferred_element_type=jnp.float32)      # [TB, NC_pad]


def _vmem_limit_bytes(frac=0.85):
    """Per-generation VMEM limit with headroom (~54 MiB on v7x, ~109 MiB on v5e/v6e)."""
    cap = 64 * 1024 * 1024                      # conservative fallback (v7x per-TC physical)
    try:
        cap = int(pltpu.get_tpu_info().vmem_capacity_bytes)
    except Exception:
        pass
    return int(cap * frac)


@functools.partial(jax.jit, static_argnames=("patch", "batch_tile"))
def simplevit_forward(x_nchw, params, *, patch, batch_tile=32):
    """x_nchw: [B, C, H, W] float32. Returns {'logits': [B, NC], 'features': [B, F]}."""
    w_embed, b_embed, w_proj, b_proj, w_fc, sigma = params
    B, C, H, W = x_nchw.shape
    ph, pw = H // patch, W // patch
    P, D = ph * pw, C * patch * patch
    E = w_embed.shape[1]
    F = w_proj.shape[1]
    NC = w_fc.shape[1]
    NCp = ((NC + 127) // 128) * 128          # lane-dense logits -> unmasked stores

    assert batch_tile % 8 == 0, "batch_tile must be a multiple of 8 (sublane tiling)"
    nt = pl.cdiv(B, batch_tile)              # number of batch tiles (grid length)
    Bp = nt * batch_tile

    # Pad ragged batches at the *image* level (zeros; fuses with the patchify transpose)
    # instead of rewriting the whole [Bp, P, D] patch tensor afterwards.
    if Bp != B:
        x_nchw = jnp.pad(x_nchw, ((0, Bp - B), (0, 0), (0, 0), (0, 0)))

    # Glue: NCHW -> [B*P, D] patchify (== Conv2d(kernel=stride=patch)), streamed as bf16.
    # TODO(synk): this transpose is a separate XLA op (one extra HBM round-trip of the
    # image); fusing it into the kernel's input DMA (allow_input_fusion / NHWC-permuted
    # w_embed rows) is the remaining input-side win, mostly relevant on v5e bandwidth.
    patches2d = (x_nchw
                 .reshape(Bp, C, ph, patch, pw, patch)
                 .transpose(0, 2, 4, 1, 3, 5)
                 .reshape(Bp * P, D)
                 .astype(jnp.bfloat16))

    # Mean-pool matrix hoisted out of the kernel: block-diagonal 1.0 entries (bf16-exact,
    # NOT 1/P which rounds in bf16); the 1/P scale is applied inside the kernel in f32.
    rows = jax.lax.broadcasted_iota(jnp.int32, (batch_tile, batch_tile * P), 0)
    cols = jax.lax.broadcasted_iota(jnp.int32, (batch_tile, batch_tile * P), 1)
    pool = jnp.where(cols // P == rows, 1.0, 0.0).astype(jnp.bfloat16)   # [TB, TB*P]

    # CosineLinear prep: L2-normalize weight columns (over feature dim), fold in sigma,
    # pad the class dimension to a multiple of 128 (padded columns are exactly zero).
    w_fc_n = (sigma * w_fc
              * jax.lax.rsqrt(jnp.maximum(jnp.sum(w_fc * w_fc, axis=0, keepdims=True),
                                          1e-12)))
    if NCp != NC:
        w_fc_n = jnp.pad(w_fc_n, ((0, 0), (0, NCp - NC)))

    kernel = functools.partial(simplevit_kernel, inv_p=1.0 / P)

    # VMEM sizing (real ViT-B-16 shapes P=196, D=E=768): the streamed patch tile is
    # TB*P*D*2 bytes, double-buffered.  TB=32 keeps 2x(~9.2 MiB patch tile) + ~19 MiB of
    # live f32 tokens + ~2.5 MiB bf16 weights under the ~54 MiB v7x budget; TB=32-64 fits
    # the 128 MiB parts (v5e/v6e).  Prefer TB such that nt is even on v7x (2 TCs).
    # Pool block-diagonal waste grows ~linearly with TB (~8% of the embed matmul at
    # TB=32); split the pool matmul into fixed sub-blocks before going past TB=64.
    # TODO(synk): pipeline_mode=pl.Buffered(1) on the constant-index weight specs would
    # halve their VMEM footprint (extra headroom on v7x).
    features_p, logits_p = pl.pallas_call(
        kernel,
        grid=(nt,),
        in_specs=[
            pl.BlockSpec((batch_tile * P, D), lambda i: (i, 0)),            # streamed tile
            pl.BlockSpec((batch_tile, batch_tile * P), lambda i: (0, 0)),   # resident pool
            pl.BlockSpec((D, E), lambda i: (0, 0)),                         # resident weights
            pl.BlockSpec((1, E), lambda i: (0, 0)),
            pl.BlockSpec((E, F), lambda i: (0, 0)),
            pl.BlockSpec((1, F), lambda i: (0, 0)),
            pl.BlockSpec((F, NCp), lambda i: (0, 0)),
        ],
        out_specs=[
            pl.BlockSpec((batch_tile, F), lambda i: (i, 0)),
            pl.BlockSpec((batch_tile, NCp), lambda i: (i, 0)),
        ],
        out_shape=[
            jax.ShapeDtypeStruct((Bp, F), jnp.float32),
            jax.ShapeDtypeStruct((Bp, NCp), jnp.float32),
        ],
        compiler_params=pltpu.CompilerParams(
            # batch tiles are independent -> megacore-shards on v7x, harmless elsewhere
            dimension_semantics=("parallel",),
            # per-generation limit with headroom (not the full physical VMEM)
            vmem_limit_bytes=_vmem_limit_bytes(),
        ),
    )(patches2d, pool, w_embed.astype(jnp.bfloat16), b_embed,
      w_proj.astype(jnp.bfloat16), b_proj, w_fc_n.astype(jnp.bfloat16))

    features = features_p[:B]
    logits = logits_p[:B, :NC]                # drop batch + class padding
    return {"logits": logits, "features": features}


def init_params(key, *, in_dim, embed_dim, feature_dim, nb_classes):
    k1, k2, k3, k4, k5 = jax.random.split(key, 5)
    s = lambda n: 1.0 / jnp.sqrt(jnp.float32(n))
    w_embed = jax.random.normal(k1, (in_dim, embed_dim), jnp.float32) * s(in_dim)
    b_embed = jax.random.normal(k2, (1, embed_dim), jnp.float32) * 0.01
    w_proj = jax.random.normal(k3, (embed_dim, feature_dim), jnp.float32) * s(embed_dim)
    b_proj = jax.random.normal(k4, (1, feature_dim), jnp.float32) * 0.01
    w_fc = jax.random.normal(k5, (feature_dim, nb_classes), jnp.float32) * s(feature_dim)
    sigma = jnp.float32(10.0)   # CosineLinear learnable temperature
    return (w_embed, b_embed, w_proj, b_proj, w_fc, sigma)


def reference_forward(x_nchw, params, *, patch):
    """Pure-JAX reference of the same forward (same bf16 casts), for correctness."""
    w_embed, b_embed, w_proj, b_proj, w_fc, sigma = params
    B, C, H, W = x_nchw.shape
    ph, pw = H // patch, W // patch
    P, D = ph * pw, C * patch * patch
    patches = (x_nchw.reshape(B, C, ph, patch, pw, patch)
               .transpose(0, 2, 4, 1, 3, 5).reshape(B * P, D))
    tokens = jnp.dot(patches.astype(jnp.bfloat16), w_embed.astype(jnp.bfloat16),
                     preferred_element_type=jnp.float32) + b_embed
    tokens = jax.nn.gelu(tokens).astype(jnp.bfloat16)
    pooled = tokens.astype(jnp.float32).reshape(B, P, -1).sum(axis=1) * (1.0 / P)
    features = jnp.dot(pooled.astype(jnp.bfloat16), w_proj.astype(jnp.bfloat16),
                       preferred_element_type=jnp.float32) + b_proj
    f_hat = features * jax.lax.rsqrt(
        jnp.maximum(jnp.sum(features * features, axis=-1, keepdims=True), 1e-12))
    w_hat = (sigma * w_fc * jax.lax.rsqrt(
        jnp.maximum(jnp.sum(w_fc * w_fc, axis=0, keepdims=True), 1e-12))
             ).astype(jnp.bfloat16)
    logits = jnp.dot(f_hat.astype(jnp.bfloat16), w_hat,
                     preferred_element_type=jnp.float32)
    return {"logits": logits, "features": features}


if __name__ == "__main__":
    # Small shapes consistent with the module's NCHW image input; PATCH=16 matches
    # ViT-B-16 (D = 3*16*16 = 768).  B=10 with batch_tile=8 exercises the image-level
    # batch-padding path and a 2-step (even, megacore-friendly) grid; production sizes
    # use the default batch_tile=32 (or 64 on 128 MiB parts).
    B, C, H, W = 10, 3, 32, 32
    PATCH = 16
    EMBED_DIM = 256        # stand-in for the real 768
    FEATURE_DIM = 512      # CLIP ViT-B-16 out_dim
    NB_CLASSES = 10        # padded to 128 inside the wrapper, sliced back after

    key = jax.random.PRNGKey(0)
    kx, kp = jax.random.split(key)
    x = jax.random.normal(kx, (B, C, H, W), jnp.float32)
    params = init_params(kp, in_dim=C * PATCH * PATCH, embed_dim=EMBED_DIM,
                         feature_dim=FEATURE_DIM, nb_classes=NB_CLASSES)

    out = simplevit_forward(x, params, patch=PATCH, batch_tile=8)
    jax.block_until_ready(out)

    ref = reference_forward(x, params, patch=PATCH)
    assert out["logits"].shape == (B, NB_CLASSES)
    assert out["features"].shape == (B, FEATURE_DIM)
    assert jnp.allclose(out["features"], ref["features"], atol=5e-3, rtol=5e-3)
    assert jnp.allclose(out["logits"], ref["logits"], atol=5e-3, rtol=5e-3)

    print("KERNEL_OK")
</pallas_src>

<mosaic_0001>
module attributes {stable_mosaic.version = 11 : i64} {
  func.func @simplevit_kernel(%arg0: i32, %arg1: memref<32x768xbf16, #tpu.memory_space<vmem>>, %arg2: memref<8x32xbf16, #tpu.memory_space<vmem>>, %arg3: memref<768x256xbf16, #tpu.memory_space<vmem>>, %arg4: memref<1x256xf32, #tpu.memory_space<vmem>>, %arg5: memref<256x512xbf16, #tpu.memory_space<vmem>>, %arg6: memref<1x512xf32, #tpu.memory_space<vmem>>, %arg7: memref<512x128xbf16, #tpu.memory_space<vmem>>, %arg8: memref<8x512xf32, #tpu.memory_space<vmem>>, %arg9: memref<8x128xf32, #tpu.memory_space<vmem>>) attributes {dimension_semantics = [#tpu.dimension_semantics<parallel>], iteration_bounds = array<i64: 2>, scalar_prefetch = 0 : i64, scratch_operands = 0 : i64, tpu.core_type = #tpu.core_type<tc>, window_params = [{transform_indices = @transform_0, window_bounds = array<i64: 32, 768>}, {pipeline_mode = #tpu.pipeline_mode<synchronous>, transform_indices = @transform_1, window_bounds = array<i64: 8, 32>}, {pipeline_mode = #tpu.pipeline_mode<synchronous>, transform_indices = @transform_2, window_bounds = array<i64: 768, 256>}, {pipeline_mode = #tpu.pipeline_mode<synchronous>, transform_indices = @transform_3, window_bounds = array<i64: 1, 256>}, {pipeline_mode = #tpu.pipeline_mode<synchronous>, transform_indices = @transform_4, window_bounds = array<i64: 256, 512>}, {pipeline_mode = #tpu.pipeline_mode<synchronous>, transform_indices = @transform_5, window_bounds = array<i64: 1, 512>}, {pipeline_mode = #tpu.pipeline_mode<synchronous>, transform_indices = @transform_6, window_bounds = array<i64: 512, 128>}, {transform_indices = @transform_7, window_bounds = array<i64: 8, 512>}, {transform_indices = @transform_8, window_bounds = array<i64: 8, 128>}]} {
    %c0 = arith.constant 0 : index
    %c0_0 = arith.constant 0 : index
    %0 = vector.load %arg1[%c0, %c0_0] : memref<32x768xbf16, #tpu.memory_space<vmem>>, vector<32x768xbf16>
    %c0_1 = arith.constant 0 : index
    %c0_2 = arith.constant 0 : index
    %1 = vector.load %arg3[%c0_1, %c0_2] : memref<768x256xbf16, #tpu.memory_space<vmem>>, vector<768x256xbf16>
    %cst = arith.constant dense<0.000000e+00> : vector<32x256xf32>
    %2 = tpu.matmul %0, %1, %cst {dimension_numbers = #tpu.dot_dimension_numbers<[1], [0], [0], [1], [0, 0, 1, 1], [], []>} : vector<32x768xbf16>, vector<768x256xbf16>, vector<32x256xf32> -> vector<32x256xf32>
    %c0_3 = arith.constant 0 : index
    %c0_4 = arith.constant 0 : index
    %3 = vector.load %arg4[%c0_3, %c0_4] : memref<1x256xf32, #tpu.memory_space<vmem>>, vector<1x256xf32>
    %4 = vector.broadcast %3 : vector<1x256xf32> to vector<32x256xf32>
    %5 = arith.addf %2, %4 : vector<32x256xf32>
    %6 = arith.mulf %5, %5 : vector<32x256xf32>
    %7 = arith.mulf %5, %6 : vector<32x256xf32>
    %cst_5 = arith.constant 4.471500e-02 : f32
    %8 = vector.broadcast %cst_5 : f32 to vector<32x256xf32>
    %9 = arith.mulf %8, %7 : vector<32x256xf32>
    %10 = arith.addf %5, %9 : vector<32x256xf32>
    %cst_6 = arith.constant 0.797884583 : f32
    %11 = vector.broadcast %cst_6 : f32 to vector<32x256xf32>
    %12 = arith.mulf %11, %10 : vector<32x256xf32>
    %13 = math.tanh %12 : vector<32x256xf32>
    %cst_7 = arith.constant 1.000000e+00 : f32
    %14 = vector.broadcast %cst_7 : f32 to vector<32x256xf32>
    %15 = arith.addf %14, %13 : vector<32x256xf32>
    %cst_8 = arith.constant 5.000000e-01 : f32
    %16 = vector.broadcast %cst_8 : f32 to vector<32x256xf32>
    %17 = arith.mulf %16, %15 : vector<32x256xf32>
    %18 = arith.mulf %5, %17 : vector<32x256xf32>
    %19 = arith.truncf %18 : vector<32x256xf32> to vector<32x256xbf16>
    %c0_9 = arith.constant 0 : index
    %c0_10 = arith.constant 0 : index
    %20 = vector.load %arg2[%c0_9, %c0_10] : memref<8x32xbf16, #tpu.memory_space<vmem>>, vector<8x32xbf16>
    %cst_11 = arith.constant dense<0.000000e+00> : vector<8x256xf32>
    %21 = tpu.matmul %20, %19, %cst_11 {dimension_numbers = #tpu.dot_dimension_numbers<[1], [0], [0], [1], [0, 0, 1, 1], [], []>} : vector<8x32xbf16>, vector<32x256xbf16>, vector<8x256xf32> -> vector<8x256xf32>
    %cst_12 = arith.constant 2.500000e-01 : f32
    %22 = vector.broadcast %cst_12 : f32 to vector<8x256xf32>
    %23 = arith.mulf %21, %22 : vector<8x256xf32>
    %24 = arith.truncf %23 : vector<8x256xf32> to vector<8x256xbf16>
    %c0_13 = arith.constant 0 : index
    %c0_14 = arith.constant 0 : index
    %25 = vector.load %arg5[%c0_13, %c0_14] : memref<256x512xbf16, #tpu.memory_space<vmem>>, vector<256x512xbf16>
    %cst_15 = arith.constant dense<0.000000e+00> : vector<8x512xf32>
    %26 = tpu.matmul %24, %25, %cst_15 {dimension_numbers = #tpu.dot_dimension_numbers<[1], [0], [0], [1], [0, 0, 1, 1], [], []>} : vector<8x256xbf16>, vector<256x512xbf16>, vector<8x512xf32> -> vector<8x512xf32>
    %c0_16 = arith.constant 0 : index
    %c0_17 = arith.constant 0 : index
    %27 = vector.load %arg6[%c0_16, %c0_17] : memref<1x512xf32, #tpu.memory_space<vmem>>, vector<1x512xf32>
    %28 = vector.broadcast %27 : vector<1x512xf32> to vector<8x512xf32>
    %29 = arith.addf %26, %28 : vector<8x512xf32>
    %c0_18 = arith.constant 0 : index
    %c0_19 = arith.constant 0 : index
    %30 = vector.load %arg8[%c0_18, %c0_19] : memref<8x512xf32, #tpu.memory_space<vmem>>, vector<8x512xf32>
    tpu.vector_store %arg8[%c0_18, %c0_19], %29 {strides = array<i32>} : memref<8x512xf32, #tpu.memory_space<vmem>>, vector<8x512xf32>,
    %31 = arith.mulf %29, %29 : vector<8x512xf32>
    %cst_20 = arith.constant dense<0.000000e+00> : vector<8xf32>
    %32 = vector.multi_reduction <add>, %31, %cst_20 [1] : vector<8x512xf32> to vector<8xf32>
    %33 = vector.shape_cast %32 : vector<8xf32> to vector<8x1xf32>
    %cst_21 = arith.constant 9.99999996E-13 : f32
    %34 = vector.broadcast %cst_21 : f32 to vector<8x1xf32>
    %35 = arith.maximumf %33, %34 : vector<8x1xf32>
    %36 = math.rsqrt %35 : vector<8x1xf32>
    %37 = vector.broadcast %36 : vector<8x1xf32> to vector<8x512xf32>
    %38 = arith.mulf %29, %37 : vector<8x512xf32>
    %39 = arith.truncf %38 : vector<8x512xf32> to vector<8x512xbf16>
    %c0_22 = arith.constant 0 : index
    %c0_23 = arith.constant 0 : index
    %40 = vector.load %arg7[%c0_22, %c0_23] : memref<512x128xbf16, #tpu.memory_space<vmem>>, vector<512x128xbf16>
    %cst_24 = arith.constant dense<0.000000e+00> : vector<8x128xf32>
    %41 = tpu.matmul %39, %40, %cst_24 {dimension_numbers = #tpu.dot_dimension_numbers<[1], [0], [0], [1], [0, 0, 1, 1], [], []>} : vector<8x512xbf16>, vector<512x128xbf16>, vector<8x128xf32> -> vector<8x128xf32>
    %c0_25 = arith.constant 0 : index
    %c0_26 = arith.constant 0 : index
    %42 = vector.load %arg9[%c0_25, %c0_26] : memref<8x128xf32, #tpu.memory_space<vmem>>, vector<8x128xf32>
    tpu.vector_store %arg9[%c0_25, %c0_26], %41 {strides = array<i32>} : memref<8x128xf32, #tpu.memory_space<vmem>>, vector<8x128xf32>,
    return
  }
  func.func @transform_0(%arg0: i32) -> (i32, i32) {
    %c0_i32 = arith.constant 0 : i32
    %c0_i32_0 = arith.constant 0 : i32
    return %arg0, %c0_i32 : i32, i32
  }
  func.func @transform_1(%arg0: i32) -> (i32, i32) {
    %c0_i32 = arith.constant 0 : i32
    %c0_i32_0 = arith.constant 0 : i32
    %c0_i32_1 = arith.constant 0 : i32
    return %c0_i32, %c0_i32_0 : i32, i32
  }
  func.func @transform_2(%arg0: i32) -> (i32, i32) {
    %c0_i32 = arith.constant 0 : i32
    %c0_i32_0 = arith.constant 0 : i32
    %c0_i32_1 = arith.constant 0 : i32
    return %c0_i32, %c0_i32_0 : i32, i32
  }
  func.func @transform_3(%arg0: i32) -> (i32, i32) {
    %c0_i32 = arith.constant 0 : i32
    %c0_i32_0 = arith.constant 0 : i32
    %c0_i32_1 = arith.constant 0 : i32
    return %c0_i32, %c0_i32_0 : i32, i32
  }
  func.func @transform_4(%arg0: i32) -> (i32, i32) {
    %c0_i32 = arith.constant 0 : i32
    %c0_i32_0 = arith.constant 0 : i32
    %c0_i32_1 = arith.constant 0 : i32
    return %c0_i32, %c0_i32_0 : i32, i32
  }
  func.func @transform_5(%arg0: i32) -> (i32, i32) {
    %c0_i32 = arith.constant 0 : i32
    %c0_i32_0 = arith.constant 0 : i32
    %c0_i32_1 = arith.constant 0 : i32
    return %c0_i32, %c0_i32_0 : i32, i32
  }
  func.func @transform_6(%arg0: i32) -> (i32, i32) {
    %c0_i32 = arith.constant 0 : i32
    %c0_i32_0 = arith.constant 0 : i32
    %c0_i32_1 = arith.constant 0 : i32
    return %c0_i32, %c0_i32_0 : i32, i32
  }
  func.func @transform_7(%arg0: i32) -> (i32, i32) {
    %c0_i32 = arith.constant 0 : i32
    %c0_i32_0 = arith.constant 0 : i32
    return %arg0, %c0_i32 : i32, i32
  }
  func.func @transform_8(%arg0: i32) -> (i32, i32) {
    %c0_i32 = arith.constant 0 : i32
    %c0_i32_0 = arith.constant 0 : i32
    return %arg0, %c0_i32 : i32, i32
  }
}

</mosaic_0001>

<llo_original>
// kernel: simplevit_forward.1
$region0: #{simplevit_forward.1}
  #allocation0 [shape = 'u32[]', space=smem, size = 0x4, offset = 0x4, fixed_abs, tag = 'smem constant byte address 0x4 - core index']
  #allocation1 [shape = 'u32[72,128]{1,0:T(1,128)}', space=vmem, size = 0x9000, scoped, tag = 'internal scratch']
  %s0 = inlined_call_operand.vmem [shape: bf16[64,768], index: 0, kind: input, shape index: {}]
  %s1 = inlined_call_operand.vmem [shape: bf16[8,32], index: 1, kind: input, shape index: {}]
  %s2 = inlined_call_operand.vmem [shape: bf16[768,256], index: 2, kind: input, shape index: {}]
  %s3 = inlined_call_operand.vmem [shape: f32[1,256], index: 3, kind: input, shape index: {}]
  %s4 = inlined_call_operand.vmem [shape: bf16[256,512], index: 4, kind: input, shape index: {}]
  %s5 = inlined_call_operand.vmem [shape: f32[1,512], index: 5, kind: input, shape index: {}]
  %s6 = inlined_call_operand.vmem [shape: bf16[512,128], index: 6, kind: input, shape index: {}]
  %s7 = inlined_call_operand.hbm [shape: f32[16,512], index: 7, kind: output, shape index: {0}]
  %s8 = inlined_call_operand.hbm [shape: f32[16,128], index: 8, kind: output, shape index: {1}]
  %9 = xla_tuple %s7, %s8
  %s10 = sld [smem:[#allocation0]]
  $region69: #{simplevit_forward.1} parent=0
    _
  %s12 = ssub.s32 1, %s10
  %s13 = scalar_select 0, %s12, %s10
  $region1: #{simplevit_forward.1} parent=0
    #allocation2 [shape = 'u8[32768]{0}', space=vmem, size = 0x8000, scoped, tag = 'output window, operand 0']
    #allocation3 [shape = 's32[2]{0}', space=sflag, size = 0x8, scoped, tag = 'scoped memory for simplevit_forward.1']
    #allocation4 [shape = 'u8[8192]{0}', space=vmem, size = 0x2000, scoped, tag = 'output window, operand 1']
    #allocation5 [shape = 's32[2]{0}', space=sflag, size = 0x8, scoped, tag = 'scoped memory for simplevit_forward.1']
    %14 = vsyncpa [#allocation3], 0
    %s15 = scalar_lea.sflag [#allocation3], 1
    %16 = vsyncpa %s15, 0
    %17 = vsyncpa [#allocation5], 0
    %s18 = scalar_lea.sflag [#allocation5], 1
    %19 = vsyncpa %s18, 0
    loop: start=0, step=1, limit=4
    $region2: #{simplevit_forward.1} parent=1 // loop_pre_header
      _
    $region3: #{simplevit_forward.1} parent=1 // loop_header
      %s21 = sphi 0, %s25
      %p22 = scmp.ge.s32.totalorder %s21, 4
      %s31 = sphi 0, %s33
      %s34 = sphi 0, %s31
      %s35 = sphi 0, %s34
      %s51 = sphi 0, %s35
      %s55 = sphi 0, %s55
      %s57 = sphi 0, %s55
      %s58 = sphi 0, %s57
      %s72 = sphi 0, %s58
      %s76 = sphi 0, %s76
      %s78 = sphi 0, %s76
      %s79 = sphi 0, %s78
      %s93 = sphi 0, %s79
      %s97 = sphi 0, %s97
      %s99 = sphi 0, %s97
      %s100 = sphi 0, %s99
      %s114 = sphi 0, %s100
      %s118 = sphi 0, %s118
      %s120 = sphi 0, %s118
      %s121 = sphi 0, %s120
      %s135 = sphi 0, %s121
      %s139 = sphi 0, %s139
      %s141 = sphi 0, %s139
      %s142 = sphi 0, %s141
      %s156 = sphi 0, %s142
      %s160 = sphi 0, %s160
      %s162 = sphi 0, %s160
      %s163 = sphi 0, %s162
      %s177 = sphi 0, %s163
      %s183 = sphi 0, %s185
      %s186 = sphi 0, %s183
      %s187 = sphi 0, %s186
      %s203 = sphi 0, %s187
      %s209 = sphi 0, %s211
      %s212 = sphi 0, %s209
      %s213 = sphi 0, %s212
      %s229 = sphi 0, %s213
    $region4: #{simplevit_forward.1} parent=1 // loop_header_branch
      %24 = sbr.rel (%p22) target = $region8
    $region5: #{simplevit_forward.1} parent=1 // loop_body
      %s26 = ssub.s32 %s21, 1
      %s27 = ssub.s32 %s21, 2
      %s28 = sadd.s32 %s21, 1
      %s29 = ssub.s32 %s21, %s28
      %p30 = scmp.eq.s32.totalorder %s29, 0
      %s32 = sadd.s32 %s31, 1
      %s33 = scalar_select %p30, %s31, %s32
      %p36 = pneg %p30
      %p37 = scmp.eq.s32.totalorder %s21, 1
      %p38 = por %p36, %p37
      %p39 = scmp.ne.s32.totalorder %s31, %s34
      %p40 = scmp.eq.s32.totalorder %s21, 0
      %p41 = por %p39, %p40
      %p42 = scmp.ne.s32.totalorder %s31, %s34
      %p43 = scmp.eq.s32.totalorder %s26, 1
      %p44 = por %p42, %p43
      %p45 = scmp.ne.s32.totalorder %s34, %s35
      %p46 = scmp.eq.s32.totalorder %s26, 0
      %p47 = por %p45, %p46
      %p48 = scmp.ne.s32.totalorder %s34, %s35
      %p49 = scmp.eq.s32.totalorder %s27, 1
      %p50 = por %p48, %p49
      %p52 = scmp.ne.s32.totalorder %s35, %s51
      %p53 = scmp.eq.s32.totalorder %s27, 0
      %p54 = por %p52, %p53
      %s56 = sadd.s32 %s55, 1
      %p59 = scmp.eq.s32.totalorder %s21, 1
      %p60 = scmp.ne.s32.totalorder %s55, %s57
      %p61 = scmp.eq.s32.totalorder %s21, 0
      %p62 = por %p60, %p61
      %p63 = scmp.ne.s32.totalorder %s55, %s57
      %p64 = scmp.eq.s32.totalorder %s26, 1
      %p65 = por %p63, %p64
      %p66 = scmp.ne.s32.totalorder %s57, %s58
      %p67 = scmp.eq.s32.totalorder %s26, 0
      %p68 = por %p66, %p67
      %p69 = scmp.ne.s32.totalorder %s57, %s58
      %p70 = scmp.eq.s32.totalorder %s27, 1
      %p71 = por %p69, %p70
      %p73 = scmp.ne.s32.totalorder %s58, %s72
      %p74 = scmp.eq.s32.totalorder %s27, 0
      %p75 = por %p73, %p74
      %s77 = sadd.s32 %s76, 1
      %p80 = scmp.eq.s32.totalorder %s21, 1
      %p81 = scmp.ne.s32.totalorder %s76, %s78
      %p82 = scmp.eq.s32.totalorder %s21, 0
      %p83 = por %p81, %p82
      %p84 = scmp.ne.s32.totalorder %s76, %s78
      %p85 = scmp.eq.s32.totalorder %s26, 1
      %p86 = por %p84, %p85
      %p87 = scmp.ne.s32.totalorder %s78, %s79
      %p88 = scmp.eq.s32.totalorder %s26, 0
      %p89 = por %p87, %p88
      %p90 = scmp.ne.s32.totalorder %s78, %s79
      %p91 = scmp.eq.s32.totalorder %s27, 1
      %p92 = por %p90, %p91
      %p94 = scmp.ne.s32.totalorder %s79, %s93
      %p95 = scmp.eq.s32.totalorder %s27, 0
      %p96 = por %p94, %p95
      %s98 = sadd.s32 %s97, 1
      %p101 = scmp.eq.s32.totalorder %s21, 1
      %p102 = scmp.ne.s32.totalorder %s97, %s99
      %p103 = scmp.eq.s32.totalorder %s21, 0
      %p104 = por %p102, %p103
      %p105 = scmp.ne.s32.totalorder %s97, %s99
      %p106 = scmp.eq.s32.totalorder %s26, 1
      %p107 = por %p105, %p106
      %p108 = scmp.ne.s32.totalorder %s99, %s100
      %p109 = scmp.eq.s32.totalorder %s26, 0
      %p110 = por %p108, %p109
      %p111 = scmp.ne.s32.totalorder %s99, %s100
      %p112 = scmp.eq.s32.totalorder %s27, 1
      %p113 = por %p111, %p112
      %p115 = scmp.ne.s32.totalorder %s100, %s114
      %p116 = scmp.eq.s32.totalorder %s27, 0
      %p117 = por %p115, %p116
      %s119 = sadd.s32 %s118, 1
      %p122 = scmp.eq.s32.totalorder %s21, 1
      %p123 = scmp.ne.s32.totalorder %s118, %s120
      %p124 = scmp.eq.s32.totalorder %s21, 0
      %p125 = por %p123, %p124
      %p126 = scmp.ne.s32.totalorder %s118, %s120
      %p127 = scmp.eq.s32.totalorder %s26, 1
      %p128 = por %p126, %p127
      %p129 = scmp.ne.s32.totalorder %s120, %s121
      %p130 = scmp.eq.s32.totalorder %s26, 0
      %p131 = por %p129, %p130
      %p132 = scmp.ne.s32.totalorder %s120, %s121
      %p133 = scmp.eq.s32.totalorder %s27, 1
      %p134 = por %p132, %p133
      %p136 = scmp.ne.s32.totalorder %s121, %s135
      %p137 = scmp.eq.s32.totalorder %s27, 0
      %p138 = por %p136, %p137
      %s140 = sadd.s32 %s139, 1
      %p143 = scmp.eq.s32.totalorder %s21, 1
      %p144 = scmp.ne.s32.totalorder %s139, %s141
      %p145 = scmp.eq.s32.totalorder %s21, 0
      %p146 = por %p144, %p145
      %p147 = scmp.ne.s32.totalorder %s139, %s141
      %p148 = scmp.eq.s32.totalorder %s26, 1
      %p149 = por %p147, %p148
      %p150 = scmp.ne.s32.totalorder %s141, %s142
      %p151 = scmp.eq.s32.totalorder %s26, 0
      %p152 = por %p150, %p151
      %p153 = scmp.ne.s32.totalorder %s141, %s142
      %p154 = scmp.eq.s32.totalorder %s27, 1
      %p155 = por %p153, %p154
      %p157 = scmp.ne.s32.totalorder %s142, %s156
      %p158 = scmp.eq.s32.totalorder %s27, 0
      %p159 = por %p157, %p158
      %s161 = sadd.s32 %s160, 1
      %p164 = scmp.eq.s32.totalorder %s21, 1
      %p165 = scmp.ne.s32.totalorder %s160, %s162
      %p166 = scmp.eq.s32.totalorder %s21, 0
      %p167 = por %p165, %p166
      %p168 = scmp.ne.s32.totalorder %s160, %s162
      %p169 = scmp.eq.s32.totalorder %s26, 1
      %p170 = por %p168, %p169
      %p171 = scmp.ne.s32.totalorder %s162, %s163
      %p172 = scmp.eq.s32.totalorder %s26, 0
      %p173 = por %p171, %p172
      %p174 = scmp.ne.s32.totalorder %s162, %s163
      %p175 = scmp.eq.s32.totalorder %s27, 1
      %p176 = por %p174, %p175
      %p178 = scmp.ne.s32.totalorder %s163, %s177
      %p179 = scmp.eq.s32.totalorder %s27, 0
      %p180 = por %p178, %p179
      %s181 = ssub.s32 %s21, %s28
      %p182 = scmp.eq.s32.totalorder %s181, 0
      %s184 = sadd.s32 %s183, 1
      %s185 = scalar_select %p182, %s183, %s184
      %p188 = pneg %p182
      %p189 = scmp.eq.s32.totalorder %s21, 1
      %p190 = por %p188, %p189
      %p191 = scmp.ne.s32.totalorder %s183, %s186
      %p192 = scmp.eq.s32.totalorder %s21, 0
      %p193 = por %p191, %p192
      %p194 = scmp.ne.s32.totalorder %s183, %s186
      %p195 = scmp.eq.s32.totalorder %s26, 1
      %p196 = por %p194, %p195
      %p197 = scmp.ne.s32.totalorder %s186, %s187
      %p198 = scmp.eq.s32.totalorder %s26, 0
      %p199 = por %p197, %p198
      %p200 = scmp.ne.s32.totalorder %s186, %s187
      %p201 = scmp.eq.s32.totalorder %s27, 1
      %p202 = por %p200, %p201
      %p204 = scmp.ne.s32.totalorder %s187, %s203
      %p205 = scmp.eq.s32.totalorder %s27, 0
      %p206 = por %p204, %p205
      %s207 = ssub.s32 %s21, %s28
      %p208 = scmp.eq.s32.totalorder %s207, 0
      %s210 = sadd.s32 %s209, 1
      %s211 = scalar_select %p208, %s209, %s210
      %p214 = pneg %p208
      %p215 = scmp.eq.s32.totalorder %s21, 1
      %p216 = por %p214, %p215
      %p217 = scmp.ne.s32.totalorder %s209, %s212
      %p218 = scmp.eq.s32.totalorder %s21, 0
      %p219 = por %p217, %p218
      %p220 = scmp.ne.s32.totalorder %s209, %s212
      %p221 = scmp.eq.s32.totalorder %s26, 1
      %p222 = por %p220, %p221
      %p223 = scmp.ne.s32.totalorder %s212, %s213
      %p224 = scmp.eq.s32.totalorder %s26, 0
      %p225 = por %p223, %p224
      %p226 = scmp.ne.s32.totalorder %s212, %s213
      %p227 = scmp.eq.s32.totalorder %s27, 1
      %p228 = por %p226, %p227
      %p230 = scmp.ne.s32.totalorder %s213, %s229
      %p231 = scmp.eq.s32.totalorder %s27, 0
      %p232 = por %p230, %p231
      %p233 = scmp.le.s32.totalorder 1, %s21
      %p234 = scmp.lt.s32.totalorder %s21, 3
      %p235 = pnand %p233, %p234
      %p236 = pneg %p235
      // Predicated region
      $region9: #{simplevit_forward.1} parent=5 // pred_check
        _
      $region10: #{simplevit_forward.1} parent=5 // pred_check_branch
        %238 = sbr.rel (%p235) target = $region12
      $region11: #{simplevit_forward.1} parent=5 // pred_region
        %s239 = ssub.s32 %s21, 1
        // Predicated region
        $region13: #{simplevit_forward.1} parent=11 // pred_check
          %p240 = pneg %p68
        $region14: #{simplevit_forward.1} parent=11 // pred_check_branch
          %242 = sbr.rel (%p240) target = $region16
        $region15: #{simplevit_forward.1} parent=11 // pred_region
          _
        $region16: #{simplevit_forward.1} parent=11 // pred_fallthru
          _
        // Predicated region
        $region17: #{simplevit_forward.1} parent=11 // pred_check
          %p243 = pneg %p89
        $region18: #{simplevit_forward.1} parent=11 // pred_check_branch
          %245 = sbr.rel (%p243) target = $region20
        $region19: #{simplevit_forward.1} parent=11 // pred_region
          _
        $region20: #{simplevit_forward.1} parent=11 // pred_fallthru
          _
        // Predicated region
        $region21: #{simplevit_forward.1} parent=11 // pred_check
          %p246 = pneg %p110
        $region22: #{simplevit_forward.1} parent=11 // pred_check_branch
          %248 = sbr.rel (%p246) target = $region24
        $region23: #{simplevit_forward.1} parent=11 // pred_region
          _
        $region24: #{simplevit_forward.1} parent=11 // pred_fallthru
          _
        // Predicated region
        $region25: #{simplevit_forward.1} parent=11 // pred_check
          %p249 = pneg %p131
        $region26: #{simplevit_forward.1} parent=11 // pred_check_branch
          %251 = sbr.rel (%p249) target = $region28
        $region27: #{simplevit_forward.1} parent=11 // pred_region
          _
        $region28: #{simplevit_forward.1} parent=11 // pred_fallthru
          _
        // Predicated region
        $region29: #{simplevit_forward.1} parent=11 // pred_check
          %p252 = pneg %p152
        $region30: #{simplevit_forward.1} parent=11 // pred_check_branch
          %254 = sbr.rel (%p252) target = $region32
        $region31: #{simplevit_forward.1} parent=11 // pred_region
          _
        $region32: #{simplevit_forward.1} parent=11 // pred_fallthru
          _
        // Predicated region
        $region33: #{simplevit_forward.1} parent=11 // pred_check
          %p255 = pneg %p173
        $region34: #{simplevit_forward.1} parent=11 // pred_check_branch
          %257 = sbr.rel (%p255) target = $region36
        $region35: #{simplevit_forward.1} parent=11 // pred_region
          _
        $region36: #{simplevit_forward.1} parent=11 // pred_fallthru
          _
      $region12: #{simplevit_forward.1} parent=5 // pred_fallthru
        _
      %p258 = scmp.lt.s32.totalorder %s21, 2
      // Predicated region
      $region37: #{simplevit_forward.1} parent=5 // pred_check
        %p259 = pneg %p258
      $region38: #{simplevit_forward.1} parent=5 // pred_check_branch
        %261 = sbr.rel (%p259) target = $region40
      $region39: #{simplevit_forward.1} parent=5 // pred_region
        // Predicated region
        $region41: #{simplevit_forward.1} parent=39 // pred_check
          %p262 = pneg %p41
        $region42: #{simplevit_forward.1} parent=39 // pred_check_branch
          %264 = sbr.rel (%p262) target = $region44
        $region43: #{simplevit_forward.1} parent=39 // pred_region
          %s265 = smul.u32 4, %s21
          %p266 = scmp.lt.s32.totalorder %s265, 7
          %s267 = scalar_select %p266, %s265, 7
          %s268 = smul.addr %s267, 6
          %s269 = smul.addr %s268, 4
          %s270 = scalar_lea.vmem %s0, %s269
          %s271 = smul.u32 4, %s21
        $region44: #{simplevit_forward.1} parent=39 // pred_fallthru
          _
      $region40: #{simplevit_forward.1} parent=5 // pred_fallthru
        _
      %p272 = scmp.le.s32.totalorder 1, %s21
      %p273 = scmp.lt.s32.totalorder %s21, 3
      %p274 = pnand %p272, %p273
      %p275 = pneg %p274
      // Predicated region
      $region45: #{simplevit_forward.1} parent=5 // pred_check
        _
      $region46: #{simplevit_forward.1} parent=5 // pred_check_branch
        %277 = sbr.rel (%p274) target = $region48
      $region47: #{simplevit_forward.1} parent=5 // pred_region
        %s278 = ssub.s32 %s21, 1
        %s279 = smul.u32 4, %s26
        %p280 = scmp.lt.s32.totalorder %s279, 7
        %s281 = scalar_select %p280, %s279, 7
        %s282 = smul.addr %s281, 6
        %s283 = smul.addr %s282, 4
        %s284 = scalar_lea.vmem %s0, %s283
        %p285 = pneg %p47
        %p286 = pneg %p44
        %p287 = pneg %p68
        %p288 = pneg %p65
        %p289 = pneg %p89
        %p290 = pneg %p86
        %p291 = pneg %p110
        %p292 = pneg %p107
        %p293 = pneg %p131
        %p294 = pneg %p128
        %p295 = pneg %p152
        %p296 = pneg %p149
        %p297 = pneg %p173
        %p298 = pneg %p170
        %p299 = pneg %p199
        %p300 = pneg %p196
        %s301 = sand.u32 %s186, 1
        %s302 = scalar_lea.sflag [#allocation3], %s301
        %s303 = sand.u32 %s186, 1
        %s304 = smul.addr %s303, 32
        %s305 = scalar_lea.vmem [#allocation2], %s304
        %p306 = pneg %p225
        %p307 = pneg %p222
        %s308 = sand.u32 %s212, 1
        %s309 = scalar_lea.sflag [#allocation5], %s308
        %s310 = sand.u32 %s212, 1
        %s311 = smul.addr %s310, 8
        %s312 = scalar_lea.vmem [#allocation4], %s311
        %s313 = smul.u32 4, %s26
        %p314 = scmp.lt.s32.totalorder %s313, 7
        %s315 = scalar_select %p314, %s313, 7
        %s316 = smul.addr %s315, 6
        %s317 = smul.addr %s316, 4
        %s318 = scalar_lea.vmem %s0, %s317
        %s319 = smul.u32 4, %s26
        %v321 = vld [vmem:[%s318] sm:$0xff]
        %v322 = vld [vmem:[%s318 + $0x8] sm:$0xff]
        %v323 = vld [vmem:[%s318 + $0x10] sm:$0xff]
        %v324 = vld [vmem:[%s318 + $0x18] sm:$0xff]
        %v325 = vld [vmem:[%s318 + $0x20] sm:$0xff]
        %v326 = vld [vmem:[%s318 + $0x28] sm:$0xff]
        %v327 = vld [vmem:[%s318 + $0x30] sm:$0xff]
        %v328 = vld [vmem:[%s318 + $0x38] sm:$0xff]
        %v329 = vld [vmem:[%s318 + $0x40] sm:$0xff]
        %v330 = vld [vmem:[%s318 + $0x48] sm:$0xff]
        %v331 = vld [vmem:[%s318 + $0x50] sm:$0xff]
        %v332 = vld [vmem:[%s318 + $0x58] sm:$0xff]
        %v333 = vld [vmem:[%s2] sm:$0xff]
        %v334 = vld [vmem:[%s2 + $0x8] sm:$0xff]
        %v335 = vld [vmem:[%s2 + $0x10] sm:$0xff]
        %v336 = vld [vmem:[%s2 + $0x18] sm:$0xff]
        %v337 = vld [vmem:[%s2 + $0x20] sm:$0xff]
        %v338 = vld [vmem:[%s2 + $0x28] sm:$0xff]
        %v339 = vld [vmem:[%s2 + $0x30] sm:$0xff]
        %v340 = vld [vmem:[%s2 + $0x38] sm:$0xff]
        %v341 = vld [vmem:[%s2 + $0x40] sm:$0xff]
        %v342 = vld [vmem:[%s2 + $0x48] sm:$0xff]
        %v343 = vld [vmem:[%s2 + $0x50] sm:$0xff]
        %v344 = vld [vmem:[%s2 + $0x58] sm:$0xff]
        %v345 = vld [vmem:[%s2 + $0x60] sm:$0xff]
        %v346 = vld [vmem:[%s2 + $0x68] sm:$0xff]
        %v347 = vld [vmem:[%s2 + $0x70] sm:$0xff]
        %v348 = vld [vmem:[%s2 + $0x78] sm:$0xff]
        %v349 = vld [vmem:[%s2 + $0x80] sm:$0xff]
        %v350 = vld [vmem:[%s2 + $0x88] sm:$0xff]
        %v351 = vld [vmem:[%s2 + $0x90] sm:$0xff]
        %v352 = vld [vmem:[%s2 + $0x98] sm:$0xff]
        %v353 = vld [vmem:[%s2 + $0xa0] sm:$0xff]
        %v354 = vld [vmem:[%s2 + $0xa8] sm:$0xff]
        %v355 = vld [vmem:[%s2 + $0xb0] sm:$0xff]
        %v356 = vld [vmem:[%s2 + $0xb8] sm:$0xff]
        %v357 = vld [vmem:[%s2 + $0xc0] sm:$0xff]
        %v358 = vld [vmem:[%s2 + $0xc8] sm:$0xff]
        %v359 = vld [vmem:[%s2 + $0xd0] sm:$0xff]
        %v360 = vld [vmem:[%s2 + $0xd8] sm:$0xff]
        %v361 = vld [vmem:[%s2 + $0xe0] sm:$0xff]
        %v362 = vld [vmem:[%s2 + $0xe8] sm:$0xff]
        %v363 = vld [vmem:[%s2 + $0xf0] sm:$0xff]
        %v364 = vld [vmem:[%s2 + $0xf8] sm:$0xff]
        %v365 = vld [vmem:[%s2 + $0x100] sm:$0xff]
        %v366 = vld [vmem:[%s2 + $0x108] sm:$0xff]
        %v367 = vld [vmem:[%s2 + $0x110] sm:$0xff]
        %v368 = vld [vmem:[%s2 + $0x118] sm:$0xff]
        %v369 = vld [vmem:[%s2 + $0x120] sm:$0xff]
        %v370 = vld [vmem:[%s2 + $0x128] sm:$0xff]
        %v371 = vld [vmem:[%s2 + $0x130] sm:$0xff]
        %v372 = vld [vmem:[%s2 + $0x138] sm:$0xff]
        %v373 = vld [vmem:[%s2 + $0x140] sm:$0xff]
        %v374 = vld [vmem:[%s2 + $0x148] sm:$0xff]
        %v375 = vld [vmem:[%s2 + $0x150] sm:$0xff]
        %v376 = vld [vmem:[%s2 + $0x158] sm:$0xff]
        %v377 = vld [vmem:[%s2 + $0x160] sm:$0xff]
        %v378 = vld [vmem:[%s2 + $0x168] sm:$0xff]
        %v379 = vld [vmem:[%s2 + $0x170] sm:$0xff]
        %v380 = vld [vmem:[%s2 + $0x178] sm:$0xff]
        %v381 = vld [vmem:[%s2 + $0x180] sm:$0xff]
        %v382 = vld [vmem:[%s2 + $0x188] sm:$0xff]
        %v383 = vld [vmem:[%s2 + $0x190] sm:$0xff]
        %v384 = vld [vmem:[%s2 + $0x198] sm:$0xff]
        %v385 = vld [vmem:[%s2 + $0x1a0] sm:$0xff]
        %v386 = vld [vmem:[%s2 + $0x1a8] sm:$0xff]
        %v387 = vld [vmem:[%s2 + $0x1b0] sm:$0xff]
        %v388 = vld [vmem:[%s2 + $0x1b8] sm:$0xff]
        %v389 = vld [vmem:[%s2 + $0x1c0] sm:$0xff]
        %v390 = vld [vmem:[%s2 + $0x1c8] sm:$0xff]
        %v391 = vld [vmem:[%s2 + $0x1d0] sm:$0xff]
        %v392 = vld [vmem:[%s2 + $0x1d8] sm:$0xff]
        %v393 = vld [vmem:[%s2 + $0x1e0] sm:$0xff]
        %v394 = vld [vmem:[%s2 + $0x1e8] sm:$0xff]
        %v395 = vld [vmem:[%s2 + $0x1f0] sm:$0xff]
        %v396 = vld [vmem:[%s2 + $0x1f8] sm:$0xff]
        %v397 = vld [vmem:[%s2 + $0x200] sm:$0xff]
        %v398 = vld [vmem:[%s2 + $0x208] sm:$0xff]
        %v399 = vld [vmem:[%s2 + $0x210] sm:$0xff]
        %v400 = vld [vmem:[%s2 + $0x218] sm:$0xff]
        %v401 = vld [vmem:[%s2 + $0x220] sm:$0xff]
        %v402 = vld [vmem:[%s2 + $0x228] sm:$0xff]
        %v403 = vld [vmem:[%s2 + $0x230] sm:$0xff]
        %v404 = vld [vmem:[%s2 + $0x238] sm:$0xff]
        %v405 = vld [vmem:[%s2 + $0x240] sm:$0xff]
        %v406 = vld [vmem:[%s2 + $0x248] sm:$0xff]
        %v407 = vld [vmem:[%s2 + $0x250] sm:$0xff]
        %v408 = vld [vmem:[%s2 + $0x258] sm:$0xff]
        %v409 = vld [vmem:[%s2 + $0x260] sm:$0xff]
        %v410 = vld [vmem:[%s2 + $0x268] sm:$0xff]
        %v411 = vld [vmem:[%s2 + $0x270] sm:$0xff]
        %v412 = vld [vmem:[%s2 + $0x278] sm:$0xff]
        %v413 = vld [vmem:[%s2 + $0x280] sm:$0xff]
        %v414 = vld [vmem:[%s2 + $0x288] sm:$0xff]
        %v415 = vld [vmem:[%s2 + $0x290] sm:$0xff]
        %v416 = vld [vmem:[%s2 + $0x298] sm:$0xff]
        %v417 = vld [vmem:[%s2 + $0x2a0] sm:$0xff]
        %v418 = vld [vmem:[%s2 + $0x2a8] sm:$0xff]
        %v419 = vld [vmem:[%s2 + $0x2b0] sm:$0xff]
        %v420 = vld [vmem:[%s2 + $0x2b8] sm:$0xff]
        %v421 = vld [vmem:[%s2 + $0x2c0] sm:$0xff]
        %v422 = vld [vmem:[%s2 + $0x2c8] sm:$0xff]
        %v423 = vld [vmem:[%s2 + $0x2d0] sm:$0xff]
        %v424 = vld [vmem:[%s2 + $0x2d8] sm:$0xff]
        %v425 = vld [vmem:[%s2 + $0x2e0] sm:$0xff]
        %v426 = vld [vmem:[%s2 + $0x2e8] sm:$0xff]
        %v427 = vld [vmem:[%s2 + $0x2f0] sm:$0xff]
        %v428 = vld [vmem:[%s2 + $0x2f8] sm:$0xff]
        %v429 = vld [vmem:[%s3] sm:$0x3]
        %v431 = vperm.slane %v429, 0
        %v432 = vperm.slane %v429, 1
        %v447 = vunpack.c.l.b16 %v321
        %v448 = vunpack.c.h.b16 %v321
        %v449 = vunpack.c.l.b16 %v322
        %v450 = vunpack.c.h.b16 %v322
        %v451 = vunpack.c.l.b16 %v323
        %v452 = vunpack.c.h.b16 %v323
        %v453 = vunpack.c.l.b16 %v324
        %v454 = vunpack.c.h.b16 %v324
        %v455 = vunpack.c.l.b16 %v325
        %v456 = vunpack.c.h.b16 %v325
        %v457 = vunpack.c.l.b16 %v326
        %v458 = vunpack.c.h.b16 %v326
        %v459 = vunpack.c.l.b16 %v327
        %v460 = vunpack.c.h.b16 %v327
        %v461 = vunpack.c.l.b16 %v328
        %v462 = vunpack.c.h.b16 %v328
        %v463 = vunpack.c.l.b16 %v329
        %v464 = vunpack.c.h.b16 %v329
        %v465 = vunpack.c.l.b16 %v330
        %v466 = vunpack.c.h.b16 %v330
        %v467 = vunpack.c.l.b16 %v331
        %v468 = vunpack.c.h.b16 %v331
        %v469 = vunpack.c.l.b16 %v332
        %v470 = vunpack.c.h.b16 %v332
        %v471 = vpack.c.b16 %v453, %v447
        %v472 = vpack.c.b16 %v454, %v448
        %v473 = vpack.c.b16 %v455, %v449
        %v474 = vpack.c.b16 %v456, %v450
        %v475 = vpack.c.b16 %v457, %v451
        %v476 = vpack.c.b16 %v458, %v452
        %v477 = vpack.c.b16 %v465, %v459
        %v478 = vpack.c.b16 %v466, %v460
        %v479 = vpack.c.b16 %v467, %v461
        %v480 = vpack.c.b16 %v468, %v462
        %v481 = vpack.c.b16 %v469, %v463
        %v482 = vpack.c.b16 %v470, %v464
        %v591 = vunpack.c.l.b16 %v333
        %v592 = vunpack.c.h.b16 %v333
        %v593 = vunpack.c.l.b16 %v334
        %v594 = vunpack.c.h.b16 %v334
        %v595 = vunpack.c.l.b16 %v335
        %v596 = vunpack.c.h.b16 %v335
        %v597 = vunpack.c.l.b16 %v336
        %v598 = vunpack.c.h.b16 %v336
        %v599 = vunpack.c.l.b16 %v337
        %v600 = vunpack.c.h.b16 %v337
        %v601 = vunpack.c.l.b16 %v338
        %v602 = vunpack.c.h.b16 %v338
        %v603 = vunpack.c.l.b16 %v339
        %v604 = vunpack.c.h.b16 %v339
        %v605 = vunpack.c.l.b16 %v340
        %v606 = vunpack.c.h.b16 %v340
        %v607 = vunpack.c.l.b16 %v341
        %v608 = vunpack.c.h.b16 %v341
        %v609 = vunpack.c.l.b16 %v342
        %v610 = vunpack.c.h.b16 %v342
        %v611 = vunpack.c.l.b16 %v343
        %v612 = vunpack.c.h.b16 %v343
        %v613 = vunpack.c.l.b16 %v344
        %v614 = vunpack.c.h.b16 %v344
        %v615 = vunpack.c.l.b16 %v345
        %v616 = vunpack.c.h.b16 %v345
        %v617 = vunpack.c.l.b16 %v346
        %v618 = vunpack.c.h.b16 %v346
        %v619 = vunpack.c.l.b16 %v347
        %v620 = vunpack.c.h.b16 %v347
        %v621 = vunpack.c.l.b16 %v348
        %v622 = vunpack.c.h.b16 %v348
        %v623 = vunpack.c.l.b16 %v349
        %v624 = vunpack.c.h.b16 %v349
        %v625 = vunpack.c.l.b16 %v350
        %v626 = vunpack.c.h.b16 %v350
        %v627 = vunpack.c.l.b16 %v351
        %v628 = vunpack.c.h.b16 %v351
        %v629 = vunpack.c.l.b16 %v352
        %v630 = vunpack.c.h.b16 %v352
        %v631 = vunpack.c.l.b16 %v353
        %v632 = vunpack.c.h.b16 %v353
        %v633 = vunpack.c.l.b16 %v354
        %v634 = vunpack.c.h.b16 %v354
        %v635 = vunpack.c.l.b16 %v355
        %v636 = vunpack.c.h.b16 %v355
        %v637 = vunpack.c.l.b16 %v356
        %v638 = vunpack.c.h.b16 %v356
        %v639 = vunpack.c.l.b16 %v357
        %v640 = vunpack.c.h.b16 %v357
        %v641 = vunpack.c.l.b16 %v358
        %v642 = vunpack.c.h.b16 %v358
        %v643 = vunpack.c.l.b16 %v359
        %v644 = vunpack.c.h.b16 %v359
        %v645 = vunpack.c.l.b16 %v360
        %v646 = vunpack.c.h.b16 %v360
        %v647 = vunpack.c.l.b16 %v361
        %v648 = vunpack.c.h.b16 %v361
        %v649 = vunpack.c.l.b16 %v362
        %v650 = vunpack.c.h.b16 %v362
        %v651 = vunpack.c.l.b16 %v363
        %v652 = vunpack.c.h.b16 %v363
        %v653 = vunpack.c.l.b16 %v364
        %v654 = vunpack.c.h.b16 %v364
        %v655 = vunpack.c.l.b16 %v365
        %v656 = vunpack.c.h.b16 %v365
        %v657 = vunpack.c.l.b16 %v366
        %v658 = vunpack.c.h.b16 %v366
        %v659 = vunpack.c.l.b16 %v367
        %v660 = vunpack.c.h.b16 %v367
        %v661 = vunpack.c.l.b16 %v368
        %v662 = vunpack.c.h.b16 %v368
        %v663 = vunpack.c.l.b16 %v369
        %v664 = vunpack.c.h.b16 %v369
        %v665 = vunpack.c.l.b16 %v370
        %v666 = vunpack.c.h.b16 %v370
        %v667 = vunpack.c.l.b16 %v371
        %v668 = vunpack.c.h.b16 %v371
        %v669 = vunpack.c.l.b16 %v372
        %v670 = vunpack.c.h.b16 %v372
        %v671 = vunpack.c.l.b16 %v373
        %v672 = vunpack.c.h.b16 %v373
        %v673 = vunpack.c.l.b16 %v374
        %v674 = vunpack.c.h.b16 %v374
        %v675 = vunpack.c.l.b16 %v375
        %v676 = vunpack.c.h.b16 %v375
        %v677 = vunpack.c.l.b16 %v376
        %v678 = vunpack.c.h.b16 %v376
        %v679 = vunpack.c.l.b16 %v377
        %v680 = vunpack.c.h.b16 %v377
        %v681 = vunpack.c.l.b16 %v378
        %v682 = vunpack.c.h.b16 %v378
        %v683 = vunpack.c.l.b16 %v379
        %v684 = vunpack.c.h.b16 %v379
        %v685 = vunpack.c.l.b16 %v380
        %v686 = vunpack.c.h.b16 %v380
        %v687 = vunpack.c.l.b16 %v381
        %v688 = vunpack.c.h.b16 %v381
        %v689 = vunpack.c.l.b16 %v382
        %v690 = vunpack.c.h.b16 %v382
        %v691 = vunpack.c.l.b16 %v383
        %v692 = vunpack.c.h.b16 %v383
        %v693 = vunpack.c.l.b16 %v384
        %v694 = vunpack.c.h.b16 %v384
        %v695 = vunpack.c.l.b16 %v385
        %v696 = vunpack.c.h.b16 %v385
        %v697 = vunpack.c.l.b16 %v386
        %v698 = vunpack.c.h.b16 %v386
        %v699 = vunpack.c.l.b16 %v387
        %v700 = vunpack.c.h.b16 %v387
        %v701 = vunpack.c.l.b16 %v388
        %v702 = vunpack.c.h.b16 %v388
        %v703 = vunpack.c.l.b16 %v389
        %v704 = vunpack.c.h.b16 %v389
        %v705 = vunpack.c.l.b16 %v390
        %v706 = vunpack.c.h.b16 %v390
        %v707 = vunpack.c.l.b16 %v391
        %v708 = vunpack.c.h.b16 %v391
        %v709 = vunpack.c.l.b16 %v392
        %v710 = vunpack.c.h.b16 %v392
        %v711 = vunpack.c.l.b16 %v393
        %v712 = vunpack.c.h.b16 %v393
        %v713 = vunpack.c.l.b16 %v394
        %v714 = vunpack.c.h.b16 %v394
        %v715 = vunpack.c.l.b16 %v395
        %v716 = vunpack.c.h.b16 %v395
        %v717 = vunpack.c.l.b16 %v396
        %v718 = vunpack.c.h.b16 %v396
        %v719 = vunpack.c.l.b16 %v397
        %v720 = vunpack.c.h.b16 %v397
        %v721 = vunpack.c.l.b16 %v398
        %v722 = vunpack.c.h.b16 %v398
        %v723 = vunpack.c.l.b16 %v399
        %v724 = vunpack.c.h.b16 %v399
        %v725 = vunpack.c.l.b16 %v400
        %v726 = vunpack.c.h.b16 %v400
        %v727 = vunpack.c.l.b16 %v401
        %v728 = vunpack.c.h.b16 %v401
        %v729 = vunpack.c.l.b16 %v402
        %v730 = vunpack.c.h.b16 %v402
        %v731 = vunpack.c.l.b16 %v403
        %v732 = vunpack.c.h.b16 %v403
        %v733 = vunpack.c.l.b16 %v404
        %v734 = vunpack.c.h.b16 %v404
        %v735 = vunpack.c.l.b16 %v405
        %v736 = vunpack.c.h.b16 %v405
        %v737 = vunpack.c.l.b16 %v406
        %v738 = vunpack.c.h.b16 %v406
        %v739 = vunpack.c.l.b16 %v407
        %v740 = vunpack.c.h.b16 %v407
        %v741 = vunpack.c.l.b16 %v408
        %v742 = vunpack.c.h.b16 %v408
        %v743 = vunpack.c.l.b16 %v409
        %v744 = vunpack.c.h.b16 %v409
        %v745 = vunpack.c.l.b16 %v410
        %v746 = vunpack.c.h.b16 %v410
        %v747 = vunpack.c.l.b16 %v411
        %v748 = vunpack.c.h.b16 %v411
        %v749 = vunpack.c.l.b16 %v412
        %v750 = vunpack.c.h.b16 %v412
        %v751 = vunpack.c.l.b16 %v413
        %v752 = vunpack.c.h.b16 %v413
        %v753 = vunpack.c.l.b16 %v414
        %v754 = vunpack.c.h.b16 %v414
        %v755 = vunpack.c.l.b16 %v415
        %v756 = vunpack.c.h.b16 %v415
        %v757 = vunpack.c.l.b16 %v416
        %v758 = vunpack.c.h.b16 %v416
        %v759 = vunpack.c.l.b16 %v417
        %v760 = vunpack.c.h.b16 %v417
        %v761 = vunpack.c.l.b16 %v418
        %v762 = vunpack.c.h.b16 %v418
        %v763 = vunpack.c.l.b16 %v419
        %v764 = vunpack.c.h.b16 %v419
        %v765 = vunpack.c.l.b16 %v420
        %v766 = vunpack.c.h.b16 %v420
        %v767 = vunpack.c.l.b16 %v421
        %v768 = vunpack.c.h.b16 %v421
        %v769 = vunpack.c.l.b16 %v422
        %v770 = vunpack.c.h.b16 %v422
        %v771 = vunpack.c.l.b16 %v423
        %v772 = vunpack.c.h.b16 %v423
        %v773 = vunpack.c.l.b16 %v424
        %v774 = vunpack.c.h.b16 %v424
        %v775 = vunpack.c.l.b16 %v425
        %v776 = vunpack.c.h.b16 %v425
        %v777 = vunpack.c.l.b16 %v426
        %v778 = vunpack.c.h.b16 %v426
        %v779 = vunpack.c.l.b16 %v427
        %v780 = vunpack.c.h.b16 %v427
        %v781 = vunpack.c.l.b16 %v428
        %v782 = vunpack.c.h.b16 %v428
        %v783 = vpack.c.b16 %v593, %v591
        %v784 = vpack.c.b16 %v594, %v592
        %v785 = vpack.c.b16 %v597, %v595
        %v786 = vpack.c.b16 %v598, %v596
        %v787 = vpack.c.b16 %v601, %v599
        %v788 = vpack.c.b16 %v602, %v600
        %v789 = vpack.c.b16 %v605, %v603
        %v790 = vpack.c.b16 %v606, %v604
        %v791 = vpack.c.b16 %v609, %v607
        %v792 = vpack.c.b16 %v610, %v608
        %v793 = vpack.c.b16 %v613, %v611
        %v794 = vpack.c.b16 %v614, %v612
        %v795 = vpack.c.b16 %v617, %v615
        %v796 = vpack.c.b16 %v618, %v616
        %v797 = vpack.c.b16 %v621, %v619
        %v798 = vpack.c.b16 %v622, %v620
        %v799 = vpack.c.b16 %v625, %v623
        %v800 = vpack.c.b16 %v626, %v624
        %v801 = vpack.c.b16 %v629, %v627
        %v802 = vpack.c.b16 %v630, %v628
        %v803 = vpack.c.b16 %v633, %v631
        %v804 = vpack.c.b16 %v634, %v632
        %v805 = vpack.c.b16 %v637, %v635
        %v806 = vpack.c.b16 %v638, %v636
        %v807 = vpack.c.b16 %v641, %v639
        %v808 = vpack.c.b16 %v642, %v640
        %v809 = vpack.c.b16 %v645, %v643
        %v810 = vpack.c.b16 %v646, %v644
        %v811 = vpack.c.b16 %v649, %v647
        %v812 = vpack.c.b16 %v650, %v648
        %v813 = vpack.c.b16 %v653, %v651
        %v814 = vpack.c.b16 %v654, %v652
        %v815 = vpack.c.b16 %v657, %v655
        %v816 = vpack.c.b16 %v658, %v656
        %v817 = vpack.c.b16 %v661, %v659
        %v818 = vpack.c.b16 %v662, %v660
        %v819 = vpack.c.b16 %v665, %v663
        %v820 = vpack.c.b16 %v666, %v664
        %v821 = vpack.c.b16 %v669, %v667
        %v822 = vpack.c.b16 %v670, %v668
        %v823 = vpack.c.b16 %v673, %v671
        %v824 = vpack.c.b16 %v674, %v672
        %v825 = vpack.c.b16 %v677, %v675
        %v826 = vpack.c.b16 %v678, %v676
        %v827 = vpack.c.b16 %v681, %v679
        %v828 = vpack.c.b16 %v682, %v680
        %v829 = vpack.c.b16 %v685, %v683
        %v830 = vpack.c.b16 %v686, %v684
        %v831 = vpack.c.b16 %v689, %v687
        %v832 = vpack.c.b16 %v690, %v688
        %v833 = vpack.c.b16 %v693, %v691
        %v834 = vpack.c.b16 %v694, %v692
        %v835 = vpack.c.b16 %v697, %v695
        %v836 = vpack.c.b16 %v698, %v696
        %v837 = vpack.c.b16 %v701, %v699
        %v838 = vpack.c.b16 %v702, %v700
        %v839 = vpack.c.b16 %v705, %v703
        %v840 = vpack.c.b16 %v706, %v704
        %v841 = vpack.c.b16 %v709, %v707
        %v842 = vpack.c.b16 %v710, %v708
        %v843 = vpack.c.b16 %v713, %v711
        %v844 = vpack.c.b16 %v714, %v712
        %v845 = vpack.c.b16 %v717, %v715
        %v846 = vpack.c.b16 %v718, %v716
        %v847 = vpack.c.b16 %v721, %v719
        %v848 = vpack.c.b16 %v722, %v720
        %v849 = vpack.c.b16 %v725, %v723
        %v850 = vpack.c.b16 %v726, %v724
        %v851 = vpack.c.b16 %v729, %v727
        %v852 = vpack.c.b16 %v730, %v728
        %v853 = vpack.c.b16 %v733, %v731
        %v854 = vpack.c.b16 %v734, %v732
        %v855 = vpack.c.b16 %v737, %v735
        %v856 = vpack.c.b16 %v738, %v736
        %v857 = vpack.c.b16 %v741, %v739
        %v858 = vpack.c.b16 %v742, %v740
        %v859 = vpack.c.b16 %v745, %v743
        %v860 = vpack.c.b16 %v746, %v744
        %v861 = vpack.c.b16 %v749, %v747
        %v862 = vpack.c.b16 %v750, %v748
        %v863 = vpack.c.b16 %v753, %v751
        %v864 = vpack.c.b16 %v754, %v752
        %v865 = vpack.c.b16 %v757, %v755
        %v866 = vpack.c.b16 %v758, %v756
        %v867 = vpack.c.b16 %v761, %v759
        %v868 = vpack.c.b16 %v762, %v760
        %v869 = vpack.c.b16 %v765, %v763
        %v870 = vpack.c.b16 %v766, %v764
        %v871 = vpack.c.b16 %v769, %v767
        %v872 = vpack.c.b16 %v770, %v768
        %v873 = vpack.c.b16 %v773, %v771
        %v874 = vpack.c.b16 %v774, %v772
        %v875 = vpack.c.b16 %v777, %v775
        %v876 = vpack.c.b16 %v778, %v776
        %v877 = vpack.c.b16 %v781, %v779
        %v878 = vpack.c.b16 %v782, %v780
        %975 = vmatpush.bf16.msra.mxu0 %v797
        %976 = vmatpush.bf16.msra.mxu0 %v795
        %977 = vmatpush.bf16.msra.mxu0 %v793
        %978 = vmatpush.bf16.msra.mxu0 %v791
        %979 = vmatpush.bf16.msra.mxu0 %v789
        %980 = vmatpush.bf16.msra.mxu0 %v787
        %981 = vmatpush.bf16.msra.mxu0 %v785
        %982 = vmatpush.bf16.msra.mxu0 %v783
        %983 = vmatmul.bf16.gmra.mxu0 %v471
        %v984 = vpop.f32.mrf.mxu0
        %v985 = vadd.f32 %v431, %v984
        %v986 = vpop.f32.mrf.mxu0
        %v987 = vadd.f32 %v431, %v986
        %988 = vmatmul.bf16.gmra.mxu0 %v477
        %v989 = vpop.f32.mrf.mxu0
        %v990 = vadd.f32 %v431, %v989
        %v991 = vpop.f32.mrf.mxu0
        %v992 = vadd.f32 %v431, %v991
        %993 = vdwg.mxu0
        %994 = vmatpush.bf16.msra.mxu0 %v813
        %995 = vmatpush.bf16.msra.mxu0 %v811
        %996 = vmatpush.bf16.msra.mxu0 %v809
        %997 = vmatpush.bf16.msra.mxu0 %v807
        %998 = vmatpush.bf16.msra.mxu0 %v805
        %999 = vmatpush.bf16.msra.mxu0 %v803
        %1000 = vmatpush.bf16.msra.mxu0 %v801
        %1001 = vmatpush.bf16.msra.mxu0 %v799
        %1002 = vmatmul.bf16.gmra.mxu0 %v472
        %v1003 = vpop.f32.mrf.mxu0
        %v1004 = vadd.f32 %v985, %v1003
        %v1005 = vpop.f32.mrf.mxu0
        %v1006 = vadd.f32 %v987, %v1005
        %1007 = vmatmul.bf16.gmra.mxu0 %v478
        %v1008 = vpop.f32.mrf.mxu0
        %v1009 = vadd.f32 %v990, %v1008
        %v1010 = vpop.f32.mrf.mxu0
        %v1011 = vadd.f32 %v992, %v1010
        %1012 = vdwg.mxu0
        %1013 = vmatpush.bf16.msra.mxu0 %v829
        %1014 = vmatpush.bf16.msra.mxu0 %v827
        %1015 = vmatpush.bf16.msra.mxu0 %v825
        %1016 = vmatpush.bf16.msra.mxu0 %v823
        %1017 = vmatpush.bf16.msra.mxu0 %v821
        %1018 = vmatpush.bf16.msra.mxu0 %v819
        %1019 = vmatpush.bf16.msra.mxu0 %v817
        %1020 = vmatpush.bf16.msra.mxu0 %v815
        %1021 = vmatmul.bf16.gmra.mxu0 %v473
        %v1022 = vpop.f32.mrf.mxu0
        %v1023 = vadd.f32 %v1004, %v1022
        %v1024 = vpop.f32.mrf.mxu0
        %v1025 = vadd.f32 %v1006, %v1024
        %1026 = vmatmul.bf16.gmra.mxu0 %v479
        %v1027 = vpop.f32.mrf.mxu0
        %v1028 = vadd.f32 %v1009, %v1027
        %v1029 = vpop.f32.mrf.mxu0
        %v1030 = vadd.f32 %v1011, %v1029
        %1031 = vdwg.mxu0
        %1032 = vmatpush.bf16.msra.mxu0 %v845
        %1033 = vmatpush.bf16.msra.mxu0 %v843
        %1034 = vmatpush.bf16.msra.mxu0 %v841
        %1035 = vmatpush.bf16.msra.mxu0 %v839
        %1036 = vmatpush.bf16.msra.mxu0 %v837
        %1037 = vmatpush.bf16.msra.mxu0 %v835
        %1038 = vmatpush.bf16.msra.mxu0 %v833
        %1039 = vmatpush.bf16.msra.mxu0 %v831
        %1040 = vmatmul.bf16.gmra.mxu0 %v474
        %v1041 = vpop.f32.mrf.mxu0
        %v1042 = vadd.f32 %v1023, %v1041
        %v1043 = vpop.f32.mrf.mxu0
        %v1044 = vadd.f32 %v1025, %v1043
        %1045 = vmatmul.bf16.gmra.mxu0 %v480
        %v1046 = vpop.f32.mrf.mxu0
        %v1047 = vadd.f32 %v1028, %v1046
        %v1048 = vpop.f32.mrf.mxu0
        %v1049 = vadd.f32 %v1030, %v1048
        %1050 = vdwg.mxu0
        %1051 = vmatpush.bf16.msra.mxu0 %v861
        %1052 = vmatpush.bf16.msra.mxu0 %v859
        %1053 = vmatpush.bf16.msra.mxu0 %v857
        %1054 = vmatpush.bf16.msra.mxu0 %v855
        %1055 = vmatpush.bf16.msra.mxu0 %v853
        %1056 = vmatpush.bf16.msra.mxu0 %v851
        %1057 = vmatpush.bf16.msra.mxu0 %v849
        %1058 = vmatpush.bf16.msra.mxu0 %v847
        %1059 = vmatmul.bf16.gmra.mxu0 %v475
        %v1060 = vpop.f32.mrf.mxu0
        %v1061 = vadd.f32 %v1042, %v1060
        %v1062 = vpop.f32.mrf.mxu0
        %v1063 = vadd.f32 %v1044, %v1062
        %1064 = vmatmul.bf16.gmra.mxu0 %v481
        %v1065 = vpop.f32.mrf.mxu0
        %v1066 = vadd.f32 %v1047, %v1065
        %v1067 = vpop.f32.mrf.mxu0
        %v1068 = vadd.f32 %v1049, %v1067
        %1069 = vdwg.mxu0
        %1070 = vmatpush.bf16.msra.mxu0 %v877
        %1071 = vmatpush.bf16.msra.mxu0 %v875
        %1072 = vmatpush.bf16.msra.mxu0 %v873
        %1073 = vmatpush.bf16.msra.mxu0 %v871
        %1074 = vmatpush.bf16.msra.mxu0 %v869
        %1075 = vmatpush.bf16.msra.mxu0 %v867
        %1076 = vmatpush.bf16.msra.mxu0 %v865
        %1077 = vmatpush.bf16.msra.mxu0 %v863
        %1078 = vmatmul.bf16.gmra.mxu0 %v476
        %v1079 = vpop.f32.mrf.mxu0
        %v1080 = vadd.f32 %v1061, %v1079
        %v1081 = vpop.f32.mrf.mxu0
        %v1082 = vadd.f32 %v1063, %v1081
        %1083 = vmatmul.bf16.gmra.mxu0 %v482
        %v1084 = vpop.f32.mrf.mxu0
        %v1085 = vadd.f32 %v1066, %v1084
        %v1086 = vpop.f32.mrf.mxu0
        %v1087 = vadd.f32 %v1068, %v1086
        %1088 = vdwg.mxu0
        %1089 = vmatpush.bf16.msra.mxu0 %v798
        %1090 = vmatpush.bf16.msra.mxu0 %v796
        %1091 = vmatpush.bf16.msra.mxu0 %v794
        %1092 = vmatpush.bf16.msra.mxu0 %v792
        %1093 = vmatpush.bf16.msra.mxu0 %v790
        %1094 = vmatpush.bf16.msra.mxu0 %v788
        %1095 = vmatpush.bf16.msra.mxu0 %v786
        %1096 = vmatpush.bf16.msra.mxu0 %v784
        %1097 = vmatmul.bf16.gmra.mxu0 %v471
        %v1098 = vpop.f32.mrf.mxu0
        %v1099 = vadd.f32 %v432, %v1098
        %v1100 = vpop.f32.mrf.mxu0
        %v1101 = vadd.f32 %v432, %v1100
        %1102 = vmatmul.bf16.gmra.mxu0 %v477
        %v1103 = vpop.f32.mrf.mxu0
        %v1104 = vadd.f32 %v432, %v1103
        %v1105 = vpop.f32.mrf.mxu0
        %v1106 = vadd.f32 %v432, %v1105
        %1107 = vdwg.mxu0
        %1108 = vmatpush.bf16.msra.mxu0 %v814
        %1109 = vmatpush.bf16.msra.mxu0 %v812
        %1110 = vmatpush.bf16.msra.mxu0 %v810
        %1111 = vmatpush.bf16.msra.mxu0 %v808
        %1112 = vmatpush.bf16.msra.mxu0 %v806
        %1113 = vmatpush.bf16.msra.mxu0 %v804
        %1114 = vmatpush.bf16.msra.mxu0 %v802
        %1115 = vmatpush.bf16.msra.mxu0 %v800
        %1116 = vmatmul.bf16.gmra.mxu0 %v472
        %v1117 = vpop.f32.mrf.mxu0
        %v1118 = vadd.f32 %v1099, %v1117
        %v1119 = vpop.f32.mrf.mxu0
        %v1120 = vadd.f32 %v1101, %v1119
        %1121 = vmatmul.bf16.gmra.mxu0 %v478
        %v1122 = vpop.f32.mrf.mxu0
        %v1123 = vadd.f32 %v1104, %v1122
        %v1124 = vpop.f32.mrf.mxu0
        %v1125 = vadd.f32 %v1106, %v1124
        %1126 = vdwg.mxu0
        %1127 = vmatpush.bf16.msra.mxu0 %v830
        %1128 = vmatpush.bf16.msra.mxu0 %v828
        %1129 = vmatpush.bf16.msra.mxu0 %v826
        %1130 = vmatpush.bf16.msra.mxu0 %v824
        %1131 = vmatpush.bf16.msra.mxu0 %v822
        %1132 = vmatpush.bf16.msra.mxu0 %v820
        %1133 = vmatpush.bf16.msra.mxu0 %v818
        %1134 = vmatpush.bf16.msra.mxu0 %v816
        %1135 = vmatmul.bf16.gmra.mxu0 %v473
        %v1136 = vpop.f32.mrf.mxu0
        %v1137 = vadd.f32 %v1118, %v1136
        %v1138 = vpop.f32.mrf.mxu0
        %v1139 = vadd.f32 %v1120, %v1138
        %1140 = vmatmul.bf16.gmra.mxu0 %v479
        %v1141 = vpop.f32.mrf.mxu0
        %v1142 = vadd.f32 %v1123, %v1141
        %v1143 = vpop.f32.mrf.mxu0
        %v1144 = vadd.f32 %v1125, %v1143
        %1145 = vdwg.mxu0
        %1146 = vmatpush.bf16.msra.mxu0 %v846
        %1147 = vmatpush.bf16.msra.mxu0 %v844
        %1148 = vmatpush.bf16.msra.mxu0 %v842
        %1149 = vmatpush.bf16.msra.mxu0 %v840
        %1150 = vmatpush.bf16.msra.mxu0 %v838
        %1151 = vmatpush.bf16.msra.mxu0 %v836
        %1152 = vmatpush.bf16.msra.mxu0 %v834
        %1153 = vmatpush.bf16.msra.mxu0 %v832
        %1154 = vmatmul.bf16.gmra.mxu0 %v474
        %v1155 = vpop.f32.mrf.mxu0
        %v1156 = vadd.f32 %v1137, %v1155
        %v1157 = vpop.f32.mrf.mxu0
        %v1158 = vadd.f32 %v1139, %v1157
        %1159 = vmatmul.bf16.gmra.mxu0 %v480
        %v1160 = vpop.f32.mrf.mxu0
        %v1161 = vadd.f32 %v1142, %v1160
        %v1162 = vpop.f32.mrf.mxu0
        %v1163 = vadd.f32 %v1144, %v1162
        %1164 = vdwg.mxu0
        %1165 = vmatpush.bf16.msra.mxu0 %v862
        %1166 = vmatpush.bf16.msra.mxu0 %v860
        %1167 = vmatpush.bf16.msra.mxu0 %v858
        %1168 = vmatpush.bf16.msra.mxu0 %v856
        %1169 = vmatpush.bf16.msra.mxu0 %v854
        %1170 = vmatpush.bf16.msra.mxu0 %v852
        %1171 = vmatpush.bf16.msra.mxu0 %v850
        %1172 = vmatpush.bf16.msra.mxu0 %v848
        %1173 = vmatmul.bf16.gmra.mxu0 %v475
        %v1174 = vpop.f32.mrf.mxu0
        %v1175 = vadd.f32 %v1156, %v1174
        %v1176 = vpop.f32.mrf.mxu0
        %v1177 = vadd.f32 %v1158, %v1176
        %1178 = vmatmul.bf16.gmra.mxu0 %v481
        %v1179 = vpop.f32.mrf.mxu0
        %v1180 = vadd.f32 %v1161, %v1179
        %v1181 = vpop.f32.mrf.mxu0
        %v1182 = vadd.f32 %v1163, %v1181
        %1183 = vdwg.mxu0
        %1184 = vmatpush.bf16.msra.mxu0 %v878
        %1185 = vmatpush.bf16.msra.mxu0 %v876
        %1186 = vmatpush.bf16.msra.mxu0 %v874
        %1187 = vmatpush.bf16.msra.mxu0 %v872
        %1188 = vmatpush.bf16.msra.mxu0 %v870
        %1189 = vmatpush.bf16.msra.mxu0 %v868
        %1190 = vmatpush.bf16.msra.mxu0 %v866
        %1191 = vmatpush.bf16.msra.mxu0 %v864
        %1192 = vmatmul.bf16.gmra.mxu0 %v476
        %v1193 = vpop.f32.mrf.mxu0
        %v1194 = vadd.f32 %v1175, %v1193
        %v1195 = vpop.f32.mrf.mxu0
        %v1196 = vadd.f32 %v1177, %v1195
        %1197 = vmatmul.bf16.gmra.mxu0 %v482
        %v1198 = vpop.f32.mrf.mxu0
        %v1199 = vadd.f32 %v1180, %v1198
        %v1200 = vpop.f32.mrf.mxu0
        %v1201 = vadd.f32 %v1182, %v1200
        %1202 = vdwg.mxu0
        %v1203 = vmul.f32 %v1080, %v1080
        %v1204 = vmul.f32 %v1194, %v1194
        %v1205 = vmul.f32 %v1082, %v1082
        %v1206 = vmul.f32 %v1196, %v1196
        %v1207 = vmul.f32 %v1085, %v1085
        %v1208 = vmul.f32 %v1199, %v1199
        %v1209 = vmul.f32 %v1087, %v1087
        %v1210 = vmul.f32 %v1201, %v1201
        %v1211 = vmul.f32 %v1080, %v1203
        %v1212 = vmul.f32 %v1194, %v1204
        %v1213 = vmul.f32 %v1082, %v1205
        %v1214 = vmul.f32 %v1196, %v1206
        %v1215 = vmul.f32 %v1085, %v1207
        %v1216 = vmul.f32 %v1199, %v1208
        %v1217 = vmul.f32 %v1087, %v1209
        %v1218 = vmul.f32 %v1201, %v1210
        %v1219 = vmul.f32 %v1211, 0.044715
        %v1220 = vmul.f32 %v1212, 0.044715
        %v1221 = vmul.f32 %v1213, 0.044715
        %v1222 = vmul.f32 %v1214, 0.044715
        %v1223 = vmul.f32 %v1215, 0.044715
        %v1224 = vmul.f32 %v1216, 0.044715
        %v1225 = vmul.f32 %v1217, 0.044715
        %v1226 = vmul.f32 %v1218, 0.044715
        %v1227 = vadd.f32 %v1080, %v1219
        %v1228 = vadd.f32 %v1194, %v1220
        %v1229 = vadd.f32 %v1082, %v1221
        %v1230 = vadd.f32 %v1196, %v1222
        %v1231 = vadd.f32 %v1085, %v1223
        %v1232 = vadd.f32 %v1199, %v1224
        %v1233 = vadd.f32 %v1087, %v1225
        %v1234 = vadd.f32 %v1201, %v1226
        %v1235 = vmul.f32 %v1227, 0.7978846
        %v1236 = vmul.f32 %v1228, 0.7978846
        %v1237 = vmul.f32 %v1229, 0.7978846
        %v1238 = vmul.f32 %v1230, 0.7978846
        %v1239 = vmul.f32 %v1231, 0.7978846
        %v1240 = vmul.f32 %v1232, 0.7978846
        %v1241 = vmul.f32 %v1233, 0.7978846
        %v1242 = vmul.f32 %v1234, 0.7978846
        %v1243 = vtanh.pop %v1235
        %v1244 = vtanh.pop %v1236
        %v1245 = vtanh.pop %v1237
        %v1246 = vtanh.pop %v1238
        %v1247 = vtanh.pop %v1239
        %v1248 = vtanh.pop %v1240
        %v1249 = vtanh.pop %v1241
        %v1250 = vtanh.pop %v1242
        %v1251 = vadd.f32 %v1243, 1.0
        %v1252 = vadd.f32 %v1244, 1.0
        %v1253 = vadd.f32 %v1245, 1.0
        %v1254 = vadd.f32 %v1246, 1.0
        %v1255 = vadd.f32 %v1247, 1.0
        %v1256 = vadd.f32 %v1248, 1.0
        %v1257 = vadd.f32 %v1249, 1.0
        %v1258 = vadd.f32 %v1250, 1.0
        %v1259 = vmul.f32 %v1251, 0.5
        %v1260 = vmul.f32 %v1252, 0.5
        %v1261 = vmul.f32 %v1253, 0.5
        %v1262 = vmul.f32 %v1254, 0.5
        %v1263 = vmul.f32 %v1255, 0.5
        %v1264 = vmul.f32 %v1256, 0.5
        %v1265 = vmul.f32 %v1257, 0.5
        %v1266 = vmul.f32 %v1258, 0.5
        %v1267 = vmul.f32 %v1080, %v1259
        %v1268 = vmul.f32 %v1194, %v1260
        %v1269 = vmul.f32 %v1082, %v1261
        %v1270 = vmul.f32 %v1196, %v1262
        %v1271 = vmul.f32 %v1085, %v1263
        %v1272 = vmul.f32 %v1199, %v1264
        %v1273 = vmul.f32 %v1087, %v1265
        %v1274 = vmul.f32 %v1201, %v1266
        %v1275 = vpack.c.bf16 %v1269, %v1267
        %v1276 = vpack.c.bf16 %v1270, %v1268
        %v1277 = vpack.c.bf16 %v1273, %v1271
        %v1278 = vpack.c.bf16 %v1274, %v1272
        %v1279 = vld [vmem:[%s1] sm:$0xf]
        %vm1280 = vcmask 261120
        %v1282 = vsel %vm1280, %v1279, 0
        %1284 = vmatpush.bf16.msra.mxu0 0
        %1285 = vmatpush.bf16.msra.mxu0 0
        %1286 = vmatpush.bf16.msra.mxu0 0
        %1287 = vmatpush.bf16.msra.mxu0 0
        %1288 = vmatpush.bf16.msra.mxu0 0
        %1289 = vmatpush.bf16.msra.mxu0 0
        %1290 = vmatpush.bf16.msra.mxu0 %v1277
        %1291 = vmatpush.bf16.msra.mxu0 %v1275
        %1292 = vmatmul.bf16.gmra.mxu0 %v1282
        %v1293 = vpop.f32.mrf.mxu0
        %v1294 = vadd.f32 0.0, %v1293
        %v1295 = vpop.f32.mrf.mxu0
        %1296 = vdwg.mxu0
        %1297 = vmatpush.bf16.msra.mxu0 0
        %1298 = vmatpush.bf16.msra.mxu0 0
        %1299 = vmatpush.bf16.msra.mxu0 0
        %1300 = vmatpush.bf16.msra.mxu0 0
        %1301 = vmatpush.bf16.msra.mxu0 0
        %1302 = vmatpush.bf16.msra.mxu0 0
        %1303 = vmatpush.bf16.msra.mxu0 %v1278
        %1304 = vmatpush.bf16.msra.mxu0 %v1276
        %1305 = vmatmul.bf16.gmra.mxu0 %v1282
        %v1306 = vpop.f32.mrf.mxu0
        %v1307 = vadd.f32 0.0, %v1306
        %v1308 = vpop.f32.mrf.mxu0
        %1309 = vdwg.mxu0
        %v1310 = vmul.f32 %v1294, 0.25
        %v1311 = vmul.f32 %v1307, 0.25
        %v1312 = vpack.c.bf16 %v1310, %v1310
        %v1313 = vpack.c.bf16 %v1311, %v1311
        %v1314 = vld [vmem:[%s4] sm:$0xff]
        %v1315 = vld [vmem:[%s4 + $0x8] sm:$0xff]
        %v1316 = vld [vmem:[%s4 + $0x10] sm:$0xff]
        %v1317 = vld [vmem:[%s4 + $0x18] sm:$0xff]
        %v1318 = vld [vmem:[%s4 + $0x20] sm:$0xff]
        %v1319 = vld [vmem:[%s4 + $0x28] sm:$0xff]
        %v1320 = vld [vmem:[%s4 + $0x30] sm:$0xff]
        %v1321 = vld [vmem:[%s4 + $0x38] sm:$0xff]
        %v1322 = vld [vmem:[%s4 + $0x40] sm:$0xff]
        %v1323 = vld [vmem:[%s4 + $0x48] sm:$0xff]
        %v1324 = vld [vmem:[%s4 + $0x50] sm:$0xff]
        %v1325 = vld [vmem:[%s4 + $0x58] sm:$0xff]
        %v1326 = vld [vmem:[%s4 + $0x60] sm:$0xff]
        %v1327 = vld [vmem:[%s4 + $0x68] sm:$0xff]
        %v1328 = vld [vmem:[%s4 + $0x70] sm:$0xff]
        %v1329 = vld [vmem:[%s4 + $0x78] sm:$0xff]
        %v1330 = vld [vmem:[%s4 + $0x80] sm:$0xff]
        %v1331 = vld [vmem:[%s4 + $0x88] sm:$0xff]
        %v1332 = vld [vmem:[%s4 + $0x90] sm:$0xff]
        %v1333 = vld [vmem:[%s4 + $0x98] sm:$0xff]
        %v1334 = vld [vmem:[%s4 + $0xa0] sm:$0xff]
        %v1335 = vld [vmem:[%s4 + $0xa8] sm:$0xff]
        %v1336 = vld [vmem:[%s4 + $0xb0] sm:$0xff]
        %v1337 = vld [vmem:[%s4 + $0xb8] sm:$0xff]
        %v1338 = vld [vmem:[%s4 + $0xc0] sm:$0xff]
        %v1339 = vld [vmem:[%s4 + $0xc8] sm:$0xff]
        %v1340 = vld [vmem:[%s4 + $0xd0] sm:$0xff]
        %v1341 = vld [vmem:[%s4 + $0xd8] sm:$0xff]
        %v1342 = vld [vmem:[%s4 + $0xe0] sm:$0xff]
        %v1343 = vld [vmem:[%s4 + $0xe8] sm:$0xff]
        %v1344 = vld [vmem:[%s4 + $0xf0] sm:$0xff]
        %v1345 = vld [vmem:[%s4 + $0xf8] sm:$0xff]
        %v1346 = vld [vmem:[%s4 + $0x100] sm:$0xff]
        %v1347 = vld [vmem:[%s4 + $0x108] sm:$0xff]
        %v1348 = vld [vmem:[%s4 + $0x110] sm:$0xff]
        %v1349 = vld [vmem:[%s4 + $0x118] sm:$0xff]
        %v1350 = vld [vmem:[%s4 + $0x120] sm:$0xff]
        %v1351 = vld [vmem:[%s4 + $0x128] sm:$0xff]
        %v1352 = vld [vmem:[%s4 + $0x130] sm:$0xff]
        %v1353 = vld [vmem:[%s4 + $0x138] sm:$0xff]
        %v1354 = vld [vmem:[%s4 + $0x140] sm:$0xff]
        %v1355 = vld [vmem:[%s4 + $0x148] sm:$0xff]
        %v1356 = vld [vmem:[%s4 + $0x150] sm:$0xff]
        %v1357 = vld [vmem:[%s4 + $0x158] sm:$0xff]
        %v1358 = vld [vmem:[%s4 + $0x160] sm:$0xff]
        %v1359 = vld [vmem:[%s4 + $0x168] sm:$0xff]
        %v1360 = vld [vmem:[%s4 + $0x170] sm:$0xff]
        %v1361 = vld [vmem:[%s4 + $0x178] sm:$0xff]
        %v1362 = vld [vmem:[%s4 + $0x180] sm:$0xff]
        %v1363 = vld [vmem:[%s4 + $0x188] sm:$0xff]
        %v1364 = vld [vmem:[%s4 + $0x190] sm:$0xff]
        %v1365 = vld [vmem:[%s4 + $0x198] sm:$0xff]
        %v1366 = vld [vmem:[%s4 + $0x1a0] sm:$0xff]
        %v1367 = vld [vmem:[%s4 + $0x1a8] sm:$0xff]
        %v1368 = vld [vmem:[%s4 + $0x1b0] sm:$0xff]
        %v1369 = vld [vmem:[%s4 + $0x1b8] sm:$0xff]
        %v1370 = vld [vmem:[%s4 + $0x1c0] sm:$0xff]
        %v1371 = vld [vmem:[%s4 + $0x1c8] sm:$0xff]
        %v1372 = vld [vmem:[%s4 + $0x1d0] sm:$0xff]
        %v1373 = vld [vmem:[%s4 + $0x1d8] sm:$0xff]
        %v1374 = vld [vmem:[%s4 + $0x1e0] sm:$0xff]
        %v1375 = vld [vmem:[%s4 + $0x1e8] sm:$0xff]
        %v1376 = vld [vmem:[%s4 + $0x1f0] sm:$0xff]
        %v1377 = vld [vmem:[%s4 + $0x1f8] sm:$0xff]
        %v1378 = vld [vmem:[%s5] sm:$0xf]
        %v1380 = vperm.slane %v1378, 0
        %v1381 = vperm.slane %v1378, 1
        %v1382 = vperm.slane %v1378, 2
        %v1383 = vperm.slane %v1378, 3
        %v1452 = vunpack.c.l.b16 %v1314
        %v1453 = vunpack.c.h.b16 %v1314
        %v1454 = vunpack.c.l.b16 %v1315
        %v1455 = vunpack.c.h.b16 %v1315
        %v1456 = vunpack.c.l.b16 %v1316
        %v1457 = vunpack.c.h.b16 %v1316
        %v1458 = vunpack.c.l.b16 %v1317
        %v1459 = vunpack.c.h.b16 %v1317
        %v1460 = vunpack.c.l.b16 %v1318
        %v1461 = vunpack.c.h.b16 %v1318
        %v1462 = vunpack.c.l.b16 %v1319
        %v1463 = vunpack.c.h.b16 %v1319
        %v1464 = vunpack.c.l.b16 %v1320
        %v1465 = vunpack.c.h.b16 %v1320
        %v1466 = vunpack.c.l.b16 %v1321
        %v1467 = vunpack.c.h.b16 %v1321
        %v1468 = vunpack.c.l.b16 %v1322
        %v1469 = vunpack.c.h.b16 %v1322
        %v1470 = vunpack.c.l.b16 %v1323
        %v1471 = vunpack.c.h.b16 %v1323
        %v1472 = vunpack.c.l.b16 %v1324
        %v1473 = vunpack.c.h.b16 %v1324
        %v1474 = vunpack.c.l.b16 %v1325
        %v1475 = vunpack.c.h.b16 %v1325
        %v1476 = vunpack.c.l.b16 %v1326
        %v1477 = vunpack.c.h.b16 %v1326
        %v1478 = vunpack.c.l.b16 %v1327
        %v1479 = vunpack.c.h.b16 %v1327
        %v1480 = vunpack.c.l.b16 %v1328
        %v1481 = vunpack.c.h.b16 %v1328
        %v1482 = vunpack.c.l.b16 %v1329
        %v1483 = vunpack.c.h.b16 %v1329
        %v1484 = vunpack.c.l.b16 %v1330
        %v1485 = vunpack.c.h.b16 %v1330
        %v1486 = vunpack.c.l.b16 %v1331
        %v1487 = vunpack.c.h.b16 %v1331
        %v1488 = vunpack.c.l.b16 %v1332
        %v1489 = vunpack.c.h.b16 %v1332
        %v1490 = vunpack.c.l.b16 %v1333
        %v1491 = vunpack.c.h.b16 %v1333
        %v1492 = vunpack.c.l.b16 %v1334
        %v1493 = vunpack.c.h.b16 %v1334
        %v1494 = vunpack.c.l.b16 %v1335
        %v1495 = vunpack.c.h.b16 %v1335
        %v1496 = vunpack.c.l.b16 %v1336
        %v1497 = vunpack.c.h.b16 %v1336
        %v1498 = vunpack.c.l.b16 %v1337
        %v1499 = vunpack.c.h.b16 %v1337
        %v1500 = vunpack.c.l.b16 %v1338
        %v1501 = vunpack.c.h.b16 %v1338
        %v1502 = vunpack.c.l.b16 %v1339
        %v1503 = vunpack.c.h.b16 %v1339
        %v1504 = vunpack.c.l.b16 %v1340
        %v1505 = vunpack.c.h.b16 %v1340
        %v1506 = vunpack.c.l.b16 %v1341
        %v1507 = vunpack.c.h.b16 %v1341
        %v1508 = vunpack.c.l.b16 %v1342
        %v1509 = vunpack.c.h.b16 %v1342
        %v1510 = vunpack.c.l.b16 %v1343
        %v1511 = vunpack.c.h.b16 %v1343
        %v1512 = vunpack.c.l.b16 %v1344
        %v1513 = vunpack.c.h.b16 %v1344
        %v1514 = vunpack.c.l.b16 %v1345
        %v1515 = vunpack.c.h.b16 %v1345
        %v1516 = vunpack.c.l.b16 %v1346
        %v1517 = vunpack.c.h.b16 %v1346
        %v1518 = vunpack.c.l.b16 %v1347
        %v1519 = vunpack.c.h.b16 %v1347
        %v1520 = vunpack.c.l.b16 %v1348
        %v1521 = vunpack.c.h.b16 %v1348
        %v1522 = vunpack.c.l.b16 %v1349
        %v1523 = vunpack.c.h.b16 %v1349
        %v1524 = vunpack.c.l.b16 %v1350
        %v1525 = vunpack.c.h.b16 %v1350
        %v1526 = vunpack.c.l.b16 %v1351
        %v1527 = vunpack.c.h.b16 %v1351
        %v1528 = vunpack.c.l.b16 %v1352
        %v1529 = vunpack.c.h.b16 %v1352
        %v1530 = vunpack.c.l.b16 %v1353
        %v1531 = vunpack.c.h.b16 %v1353
        %v1532 = vunpack.c.l.b16 %v1354
        %v1533 = vunpack.c.h.b16 %v1354
        %v1534 = vunpack.c.l.b16 %v1355
        %v1535 = vunpack.c.h.b16 %v1355
        %v1536 = vunpack.c.l.b16 %v1356
        %v1537 = vunpack.c.h.b16 %v1356
        %v1538 = vunpack.c.l.b16 %v1357
        %v1539 = vunpack.c.h.b16 %v1357
        %v1540 = vunpack.c.l.b16 %v1358
        %v1541 = vunpack.c.h.b16 %v1358
        %v1542 = vunpack.c.l.b16 %v1359
        %v1543 = vunpack.c.h.b16 %v1359
        %v1544 = vunpack.c.l.b16 %v1360
        %v1545 = vunpack.c.h.b16 %v1360
        %v1546 = vunpack.c.l.b16 %v1361
        %v1547 = vunpack.c.h.b16 %v1361
        %v1548 = vunpack.c.l.b16 %v1362
        %v1549 = vunpack.c.h.b16 %v1362
        %v1550 = vunpack.c.l.b16 %v1363
        %v1551 = vunpack.c.h.b16 %v1363
        %v1552 = vunpack.c.l.b16 %v1364
        %v1553 = vunpack.c.h.b16 %v1364
        %v1554 = vunpack.c.l.b16 %v1365
        %v1555 = vunpack.c.h.b16 %v1365
        %v1556 = vunpack.c.l.b16 %v1366
        %v1557 = vunpack.c.h.b16 %v1366
        %v1558 = vunpack.c.l.b16 %v1367
        %v1559 = vunpack.c.h.b16 %v1367
        %v1560 = vunpack.c.l.b16 %v1368
        %v1561 = vunpack.c.h.b16 %v1368
        %v1562 = vunpack.c.l.b16 %v1369
        %v1563 = vunpack.c.h.b16 %v1369
        %v1564 = vunpack.c.l.b16 %v1370
        %v1565 = vunpack.c.h.b16 %v1370
        %v1566 = vunpack.c.l.b16 %v1371
        %v1567 = vunpack.c.h.b16 %v1371
        %v1568 = vunpack.c.l.b16 %v1372
        %v1569 = vunpack.c.h.b16 %v1372
        %v1570 = vunpack.c.l.b16 %v1373
        %v1571 = vunpack.c.h.b16 %v1373
        %v1572 = vunpack.c.l.b16 %v1374
        %v1573 = vunpack.c.h.b16 %v1374
        %v1574 = vunpack.c.l.b16 %v1375
        %v1575 = vunpack.c.h.b16 %v1375
        %v1576 = vunpack.c.l.b16 %v1376
        %v1577 = vunpack.c.h.b16 %v1376
        %v1578 = vunpack.c.l.b16 %v1377
        %v1579 = vunpack.c.h.b16 %v1377
        %v1580 = vpack.c.b16 %v1456, %v1452
        %v1581 = vpack.c.b16 %v1457, %v1453
        %v1582 = vpack.c.b16 %v1458, %v1454
        %v1583 = vpack.c.b16 %v1459, %v1455
        %v1584 = vpack.c.b16 %v1464, %v1460
        %v1585 = vpack.c.b16 %v1465, %v1461
        %v1586 = vpack.c.b16 %v1466, %v1462
        %v1587 = vpack.c.b16 %v1467, %v1463
        %v1588 = vpack.c.b16 %v1472, %v1468
        %v1589 = vpack.c.b16 %v1473, %v1469
        %v1590 = vpack.c.b16 %v1474, %v1470
        %v1591 = vpack.c.b16 %v1475, %v1471
        %v1592 = vpack.c.b16 %v1480, %v1476
        %v1593 = vpack.c.b16 %v1481, %v1477
        %v1594 = vpack.c.b16 %v1482, %v1478
        %v1595 = vpack.c.b16 %v1483, %v1479
        %v1596 = vpack.c.b16 %v1488, %v1484
        %v1597 = vpack.c.b16 %v1489, %v1485
        %v1598 = vpack.c.b16 %v1490, %v1486
        %v1599 = vpack.c.b16 %v1491, %v1487
        %v1600 = vpack.c.b16 %v1496, %v1492
        %v1601 = vpack.c.b16 %v1497, %v1493
        %v1602 = vpack.c.b16 %v1498, %v1494
        %v1603 = vpack.c.b16 %v1499, %v1495
        %v1604 = vpack.c.b16 %v1504, %v1500
        %v1605 = vpack.c.b16 %v1505, %v1501
        %v1606 = vpack.c.b16 %v1506, %v1502
        %v1607 = vpack.c.b16 %v1507, %v1503
        %v1608 = vpack.c.b16 %v1512, %v1508
        %v1609 = vpack.c.b16 %v1513, %v1509
        %v1610 = vpack.c.b16 %v1514, %v1510
        %v1611 = vpack.c.b16 %v1515, %v1511
        %v1612 = vpack.c.b16 %v1520, %v1516
        %v1613 = vpack.c.b16 %v1521, %v1517
        %v1614 = vpack.c.b16 %v1522, %v1518
        %v1615 = vpack.c.b16 %v1523, %v1519
        %v1616 = vpack.c.b16 %v1528, %v1524
        %v1617 = vpack.c.b16 %v1529, %v1525
        %v1618 = vpack.c.b16 %v1530, %v1526
        %v1619 = vpack.c.b16 %v1531, %v1527
        %v1620 = vpack.c.b16 %v1536, %v1532
        %v1621 = vpack.c.b16 %v1537, %v1533
        %v1622 = vpack.c.b16 %v1538, %v1534
        %v1623 = vpack.c.b16 %v1539, %v1535
        %v1624 = vpack.c.b16 %v1544, %v1540
        %v1625 = vpack.c.b16 %v1545, %v1541
        %v1626 = vpack.c.b16 %v1546, %v1542
        %v1627 = vpack.c.b16 %v1547, %v1543
        %v1628 = vpack.c.b16 %v1552, %v1548
        %v1629 = vpack.c.b16 %v1553, %v1549
        %v1630 = vpack.c.b16 %v1554, %v1550
        %v1631 = vpack.c.b16 %v1555, %v1551
        %v1632 = vpack.c.b16 %v1560, %v1556
        %v1633 = vpack.c.b16 %v1561, %v1557
        %v1634 = vpack.c.b16 %v1562, %v1558
        %v1635 = vpack.c.b16 %v1563, %v1559
        %v1636 = vpack.c.b16 %v1568, %v1564
        %v1637 = vpack.c.b16 %v1569, %v1565
        %v1638 = vpack.c.b16 %v1570, %v1566
        %v1639 = vpack.c.b16 %v1571, %v1567
        %v1640 = vpack.c.b16 %v1576, %v1572
        %v1641 = vpack.c.b16 %v1577, %v1573
        %v1642 = vpack.c.b16 %v1578, %v1574
        %v1643 = vpack.c.b16 %v1579, %v1575
        %1708 = vmatpush.bf16.msra.mxu0 %v1608
        %1709 = vmatpush.bf16.msra.mxu0 %v1604
        %1710 = vmatpush.bf16.msra.mxu0 %v1600
        %1711 = vmatpush.bf16.msra.mxu0 %v1596
        %1712 = vmatpush.bf16.msra.mxu0 %v1592
        %1713 = vmatpush.bf16.msra.mxu0 %v1588
        %1714 = vmatpush.bf16.msra.mxu0 %v1584
        %1715 = vmatpush.bf16.msra.mxu0 %v1580
        %1716 = vmatmul.bf16.gmra.mxu0 %v1312
        %v1717 = vpop.f32.mrf.mxu0
        %v1718 = vadd.f32 %v1380, %v1717
        %v1719 = vpop.f32.mrf.mxu0
        %1720 = vdwg.mxu0
        %1721 = vmatpush.bf16.msra.mxu0 %v1640
        %1722 = vmatpush.bf16.msra.mxu0 %v1636
        %1723 = vmatpush.bf16.msra.mxu0 %v1632
        %1724 = vmatpush.bf16.msra.mxu0 %v1628
        %1725 = vmatpush.bf16.msra.mxu0 %v1624
        %1726 = vmatpush.bf16.msra.mxu0 %v1620
        %1727 = vmatpush.bf16.msra.mxu0 %v1616
        %1728 = vmatpush.bf16.msra.mxu0 %v1612
        %1729 = vmatmul.bf16.gmra.mxu0 %v1313
        %v1730 = vpop.f32.mrf.mxu0
        %v1731 = vadd.f32 %v1718, %v1730
        %v1732 = vpop.f32.mrf.mxu0
        %1733 = vdwg.mxu0
        %1734 = vmatpush.bf16.msra.mxu0 %v1609
        %1735 = vmatpush.bf16.msra.mxu0 %v1605
        %1736 = vmatpush.bf16.msra.mxu0 %v1601
        %1737 = vmatpush.bf16.msra.mxu0 %v1597
        %1738 = vmatpush.bf16.msra.mxu0 %v1593
        %1739 = vmatpush.bf16.msra.mxu0 %v1589
        %1740 = vmatpush.bf16.msra.mxu0 %v1585
        %1741 = vmatpush.bf16.msra.mxu0 %v1581
        %1742 = vmatmul.bf16.gmra.mxu0 %v1312
        %v1743 = vpop.f32.mrf.mxu0
        %v1744 = vadd.f32 %v1381, %v1743
        %v1745 = vpop.f32.mrf.mxu0
        %1746 = vdwg.mxu0
        %1747 = vmatpush.bf16.msra.mxu0 %v1641
        %1748 = vmatpush.bf16.msra.mxu0 %v1637
        %1749 = vmatpush.bf16.msra.mxu0 %v1633
        %1750 = vmatpush.bf16.msra.mxu0 %v1629
        %1751 = vmatpush.bf16.msra.mxu0 %v1625
        %1752 = vmatpush.bf16.msra.mxu0 %v1621
        %1753 = vmatpush.bf16.msra.mxu0 %v1617
        %1754 = vmatpush.bf16.msra.mxu0 %v1613
        %1755 = vmatmul.bf16.gmra.mxu0 %v1313
        %v1756 = vpop.f32.mrf.mxu0
        %v1757 = vadd.f32 %v1744, %v1756
        %v1758 = vpop.f32.mrf.mxu0
        %1759 = vdwg.mxu0
        %1760 = vmatpush.bf16.msra.mxu0 %v1610
        %1761 = vmatpush.bf16.msra.mxu0 %v1606
        %1762 = vmatpush.bf16.msra.mxu0 %v1602
        %1763 = vmatpush.bf16.msra.mxu0 %v1598
        %1764 = vmatpush.bf16.msra.mxu0 %v1594
        %1765 = vmatpush.bf16.msra.mxu0 %v1590
        %1766 = vmatpush.bf16.msra.mxu0 %v1586
        %1767 = vmatpush.bf16.msra.mxu0 %v1582
        %1768 = vmatmul.bf16.gmra.mxu0 %v1312
        %v1769 = vpop.f32.mrf.mxu0
        %v1770 = vadd.f32 %v1382, %v1769
        %v1771 = vpop.f32.mrf.mxu0
        %1772 = vdwg.mxu0
        %1773 = vmatpush.bf16.msra.mxu0 %v1642
        %1774 = vmatpush.bf16.msra.mxu0 %v1638
        %1775 = vmatpush.bf16.msra.mxu0 %v1634
        %1776 = vmatpush.bf16.msra.mxu0 %v1630
        %1777 = vmatpush.bf16.msra.mxu0 %v1626
        %1778 = vmatpush.bf16.msra.mxu0 %v1622
        %1779 = vmatpush.bf16.msra.mxu0 %v1618
        %1780 = vmatpush.bf16.msra.mxu0 %v1614
        %1781 = vmatmul.bf16.gmra.mxu0 %v1313
        %v1782 = vpop.f32.mrf.mxu0
        %v1783 = vadd.f32 %v1770, %v1782
        %v1784 = vpop.f32.mrf.mxu0
        %1785 = vdwg.mxu0
        %1786 = vmatpush.bf16.msra.mxu0 %v1611
        %1787 = vmatpush.bf16.msra.mxu0 %v1607
        %1788 = vmatpush.bf16.msra.mxu0 %v1603
        %1789 = vmatpush.bf16.msra.mxu0 %v1599
        %1790 = vmatpush.bf16.msra.mxu0 %v1595
        %1791 = vmatpush.bf16.msra.mxu0 %v1591
        %1792 = vmatpush.bf16.msra.mxu0 %v1587
        %1793 = vmatpush.bf16.msra.mxu0 %v1583
        %1794 = vmatmul.bf16.gmra.mxu0 %v1312
        %v1795 = vpop.f32.mrf.mxu0
        %v1796 = vadd.f32 %v1383, %v1795
        %v1797 = vpop.f32.mrf.mxu0
        %1798 = vdwg.mxu0
        %1799 = vmatpush.bf16.msra.mxu0 %v1643
        %1800 = vmatpush.bf16.msra.mxu0 %v1639
        %1801 = vmatpush.bf16.msra.mxu0 %v1635
        %1802 = vmatpush.bf16.msra.mxu0 %v1631
        %1803 = vmatpush.bf16.msra.mxu0 %v1627
        %1804 = vmatpush.bf16.msra.mxu0 %v1623
        %1805 = vmatpush.bf16.msra.mxu0 %v1619
        %1806 = vmatpush.bf16.msra.mxu0 %v1615
        %1807 = vmatmul.bf16.gmra.mxu0 %v1313
        %v1808 = vpop.f32.mrf.mxu0
        %v1809 = vadd.f32 %v1796, %v1808
        %v1810 = vpop.f32.mrf.mxu0
        %1811 = vdwg.mxu0
        %1812 = vst [vmem:[%s305] sm:$0xff] %v1731
        %1813 = vst [vmem:[%s305 + $0x8] sm:$0xff] %v1757
        %1814 = vst [vmem:[%s305 + $0x10] sm:$0xff] %v1783
        %1815 = vst [vmem:[%s305 + $0x18] sm:$0xff] %v1809
        %v1816 = vmul.f32 %v1731, %v1731
        %v1817 = vmul.f32 %v1757, %v1757
        %v1818 = vmul.f32 %v1783, %v1783
        %v1819 = vmul.f32 %v1809, %v1809
        %v1820 = vadd.f32 %v1816, %v1817
        %v1821 = vadd.f32 %v1820, %v1818
        %v1822 = vadd.f32 %v1821, %v1819
        %1823 = vadd.xlane.f32.xlu0 %v1822
        %v1824 = vpop.xlane.xlu0 %1823
        %v1825 = vmax.f32 %v1824, 1e-12
        %v1826 = vrsqrt.pop %v1825
        %v1827 = vmul.f32 %v1826, %v1825
        %v1828 = vmul.f32 %v1827, %v1826
        %v1829 = vmul.f32 0.5, %v1828
        %v1830 = vsub.f32 1.5, %v1829
        %v1831 = vmul.f32 %v1826, %v1830
        %vm1832 = vweird.f32 %v1825
        %vm1833 = vweird.f32 %v1826
        %vm1834 = vmor %vm1832, %vm1833
        %v1835 = vsel %vm1834, %v1826, %v1831
        %v1836 = vmul.f32 %v1731, %v1835
        %v1837 = vmul.f32 %v1757, %v1835
        %v1838 = vmul.f32 %v1783, %v1835
        %v1839 = vmul.f32 %v1809, %v1835
        %v1840 = vpack.c.bf16 %v1836, %v1836
        %v1841 = vpack.c.bf16 %v1837, %v1837
        %v1842 = vpack.c.bf16 %v1838, %v1838
        %v1843 = vpack.c.bf16 %v1839, %v1839
        %v1844 = vld [vmem:[%s6] sm:$0xf]
        %v1845 = vld [vmem:[%s6 + $0x4] sm:$0xf]
        %v1846 = vld [vmem:[%s6 + $0x8] sm:$0xf]
        %v1847 = vld [vmem:[%s6 + $0xc] sm:$0xf]
        %v1848 = vld [vmem:[%s6 + $0x10] sm:$0xf]
        %v1849 = vld [vmem:[%s6 + $0x14] sm:$0xf]
        %v1850 = vld [vmem:[%s6 + $0x18] sm:$0xf]
        %v1851 = vld [vmem:[%s6 + $0x1c] sm:$0xf]
        %v1852 = vld [vmem:[%s6 + $0x20] sm:$0xf]
        %v1853 = vld [vmem:[%s6 + $0x24] sm:$0xf]
        %v1854 = vld [vmem:[%s6 + $0x28] sm:$0xf]
        %v1855 = vld [vmem:[%s6 + $0x2c] sm:$0xf]
        %v1856 = vld [vmem:[%s6 + $0x30] sm:$0xf]
        %v1857 = vld [vmem:[%s6 + $0x34] sm:$0xf]
        %v1858 = vld [vmem:[%s6 + $0x38] sm:$0xf]
        %v1859 = vld [vmem:[%s6 + $0x3c] sm:$0xf]
        %v1860 = vld [vmem:[%s6 + $0x40] sm:$0xf]
        %v1861 = vld [vmem:[%s6 + $0x44] sm:$0xf]
        %v1862 = vld [vmem:[%s6 + $0x48] sm:$0xf]
        %v1863 = vld [vmem:[%s6 + $0x4c] sm:$0xf]
        %v1864 = vld [vmem:[%s6 + $0x50] sm:$0xf]
        %v1865 = vld [vmem:[%s6 + $0x54] sm:$0xf]
        %v1866 = vld [vmem:[%s6 + $0x58] sm:$0xf]
        %v1867 = vld [vmem:[%s6 + $0x5c] sm:$0xf]
        %v1868 = vld [vmem:[%s6 + $0x60] sm:$0xf]
        %v1869 = vld [vmem:[%s6 + $0x64] sm:$0xf]
        %v1870 = vld [vmem:[%s6 + $0x68] sm:$0xf]
        %v1871 = vld [vmem:[%s6 + $0x6c] sm:$0xf]
        %v1872 = vld [vmem:[%s6 + $0x70] sm:$0xf]
        %v1873 = vld [vmem:[%s6 + $0x74] sm:$0xf]
        %v1874 = vld [vmem:[%s6 + $0x78] sm:$0xf]
        %v1875 = vld [vmem:[%s6 + $0x7c] sm:$0xf]
        %v1876 = vld [vmem:[%s6 + $0x80] sm:$0xf]
        %v1877 = vld [vmem:[%s6 + $0x84] sm:$0xf]
        %v1878 = vld [vmem:[%s6 + $0x88] sm:$0xf]
        %v1879 = vld [vmem:[%s6 + $0x8c] sm:$0xf]
        %v1880 = vld [vmem:[%s6 + $0x90] sm:$0xf]
        %v1881 = vld [vmem:[%s6 + $0x94] sm:$0xf]
        %v1882 = vld [vmem:[%s6 + $0x98] sm:$0xf]
        %v1883 = vld [vmem:[%s6 + $0x9c] sm:$0xf]
        %v1884 = vld [vmem:[%s6 + $0xa0] sm:$0xf]
        %v1885 = vld [vmem:[%s6 + $0xa4] sm:$0xf]
        %v1886 = vld [vmem:[%s6 + $0xa8] sm:$0xf]
        %v1887 = vld [vmem:[%s6 + $0xac] sm:$0xf]
        %v1888 = vld [vmem:[%s6 + $0xb0] sm:$0xf]
        %v1889 = vld [vmem:[%s6 + $0xb4] sm:$0xf]
        %v1890 = vld [vmem:[%s6 + $0xb8] sm:$0xf]
        %v1891 = vld [vmem:[%s6 + $0xbc] sm:$0xf]
        %v1892 = vld [vmem:[%s6 + $0xc0] sm:$0xf]
        %v1893 = vld [vmem:[%s6 + $0xc4] sm:$0xf]
        %v1894 = vld [vmem:[%s6 + $0xc8] sm:$0xf]
        %v1895 = vld [vmem:[%s6 + $0xcc] sm:$0xf]
        %v1896 = vld [vmem:[%s6 + $0xd0] sm:$0xf]
        %v1897 = vld [vmem:[%s6 + $0xd4] sm:$0xf]
        %v1898 = vld [vmem:[%s6 + $0xd8] sm:$0xf]
        %v1899 = vld [vmem:[%s6 + $0xdc] sm:$0xf]
        %v1900 = vld [vmem:[%s6 + $0xe0] sm:$0xf]
        %v1901 = vld [vmem:[%s6 + $0xe4] sm:$0xf]
        %v1902 = vld [vmem:[%s6 + $0xe8] sm:$0xf]
        %v1903 = vld [vmem:[%s6 + $0xec] sm:$0xf]
        %v1904 = vld [vmem:[%s6 + $0xf0] sm:$0xf]
        %v1905 = vld [vmem:[%s6 + $0xf4] sm:$0xf]
        %v1906 = vld [vmem:[%s6 + $0xf8] sm:$0xf]
        %v1907 = vld [vmem:[%s6 + $0xfc] sm:$0xf]
        %v1972 = vunpack.c.l.b16 %v1844
        %v1973 = vunpack.c.l.b16 %v1845
        %v1974 = vunpack.c.l.b16 %v1846
        %v1975 = vunpack.c.l.b16 %v1847
        %v1976 = vunpack.c.l.b16 %v1848
        %v1977 = vunpack.c.l.b16 %v1849
        %v1978 = vunpack.c.l.b16 %v1850
        %v1979 = vunpack.c.l.b16 %v1851
        %v1980 = vunpack.c.l.b16 %v1852
        %v1981 = vunpack.c.l.b16 %v1853
        %v1982 = vunpack.c.l.b16 %v1854
        %v1983 = vunpack.c.l.b16 %v1855
        %v1984 = vunpack.c.l.b16 %v1856
        %v1985 = vunpack.c.l.b16 %v1857
        %v1986 = vunpack.c.l.b16 %v1858
        %v1987 = vunpack.c.l.b16 %v1859
        %v1988 = vunpack.c.l.b16 %v1860
        %v1989 = vunpack.c.l.b16 %v1861
        %v1990 = vunpack.c.l.b16 %v1862
        %v1991 = vunpack.c.l.b16 %v1863
        %v1992 = vunpack.c.l.b16 %v1864
        %v1993 = vunpack.c.l.b16 %v1865
        %v1994 = vunpack.c.l.b16 %v1866
        %v1995 = vunpack.c.l.b16 %v1867
        %v1996 = vunpack.c.l.b16 %v1868
        %v1997 = vunpack.c.l.b16 %v1869
        %v1998 = vunpack.c.l.b16 %v1870
        %v1999 = vunpack.c.l.b16 %v1871
        %v2000 = vunpack.c.l.b16 %v1872
        %v2001 = vunpack.c.l.b16 %v1873
        %v2002 = vunpack.c.l.b16 %v1874
        %v2003 = vunpack.c.l.b16 %v1875
        %v2004 = vunpack.c.l.b16 %v1876
        %v2005 = vunpack.c.l.b16 %v1877
        %v2006 = vunpack.c.l.b16 %v1878
        %v2007 = vunpack.c.l.b16 %v1879
        %v2008 = vunpack.c.l.b16 %v1880
        %v2009 = vunpack.c.l.b16 %v1881
        %v2010 = vunpack.c.l.b16 %v1882
        %v2011 = vunpack.c.l.b16 %v1883
        %v2012 = vunpack.c.l.b16 %v1884
        %v2013 = vunpack.c.l.b16 %v1885
        %v2014 = vunpack.c.l.b16 %v1886
        %v2015 = vunpack.c.l.b16 %v1887
        %v2016 = vunpack.c.l.b16 %v1888
        %v2017 = vunpack.c.l.b16 %v1889
        %v2018 = vunpack.c.l.b16 %v1890
        %v2019 = vunpack.c.l.b16 %v1891
        %v2020 = vunpack.c.l.b16 %v1892
        %v2021 = vunpack.c.l.b16 %v1893
        %v2022 = vunpack.c.l.b16 %v1894
        %v2023 = vunpack.c.l.b16 %v1895
        %v2024 = vunpack.c.l.b16 %v1896
        %v2025 = vunpack.c.l.b16 %v1897
        %v2026 = vunpack.c.l.b16 %v1898
        %v2027 = vunpack.c.l.b16 %v1899
        %v2028 = vunpack.c.l.b16 %v1900
        %v2029 = vunpack.c.l.b16 %v1901
        %v2030 = vunpack.c.l.b16 %v1902
        %v2031 = vunpack.c.l.b16 %v1903
        %v2032 = vunpack.c.l.b16 %v1904
        %v2033 = vunpack.c.l.b16 %v1905
        %v2034 = vunpack.c.l.b16 %v1906
        %v2035 = vunpack.c.l.b16 %v1907
        %v2036 = vpack.c.b16 %v1973, %v1972
        %v2037 = vpack.c.b16 %v1975, %v1974
        %v2038 = vpack.c.b16 %v1977, %v1976
        %v2039 = vpack.c.b16 %v1979, %v1978
        %v2040 = vpack.c.b16 %v1981, %v1980
        %v2041 = vpack.c.b16 %v1983, %v1982
        %v2042 = vpack.c.b16 %v1985, %v1984
        %v2043 = vpack.c.b16 %v1987, %v1986
        %v2044 = vpack.c.b16 %v1989, %v1988
        %v2045 = vpack.c.b16 %v1991, %v1990
        %v2046 = vpack.c.b16 %v1993, %v1992
        %v2047 = vpack.c.b16 %v1995, %v1994
        %v2048 = vpack.c.b16 %v1997, %v1996
        %v2049 = vpack.c.b16 %v1999, %v1998
        %v2050 = vpack.c.b16 %v2001, %v2000
        %v2051 = vpack.c.b16 %v2003, %v2002
        %v2052 = vpack.c.b16 %v2005, %v2004
        %v2053 = vpack.c.b16 %v2007, %v2006
        %v2054 = vpack.c.b16 %v2009, %v2008
        %v2055 = vpack.c.b16 %v2011, %v2010
        %v2056 = vpack.c.b16 %v2013, %v2012
        %v2057 = vpack.c.b16 %v2015, %v2014
        %v2058 = vpack.c.b16 %v2017, %v2016
        %v2059 = vpack.c.b16 %v2019, %v2018
        %v2060 = vpack.c.b16 %v2021, %v2020
        %v2061 = vpack.c.b16 %v2023, %v2022
        %v2062 = vpack.c.b16 %v2025, %v2024
        %v2063 = vpack.c.b16 %v2027, %v2026
        %v2064 = vpack.c.b16 %v2029, %v2028
        %v2065 = vpack.c.b16 %v2031, %v2030
        %v2066 = vpack.c.b16 %v2033, %v2032
        %v2067 = vpack.c.b16 %v2035, %v2034
        %2100 = vmatpush.bf16.msra.mxu0 %v2043
        %2101 = vmatpush.bf16.msra.mxu0 %v2042
        %2102 = vmatpush.bf16.msra.mxu0 %v2041
        %2103 = vmatpush.bf16.msra.mxu0 %v2040
        %2104 = vmatpush.bf16.msra.mxu0 %v2039
        %2105 = vmatpush.bf16.msra.mxu0 %v2038
        %2106 = vmatpush.bf16.msra.mxu0 %v2037
        %2107 = vmatpush.bf16.msra.mxu0 %v2036
        %2108 = vmatmul.bf16.gmra.mxu0 %v1840
        %v2109 = vpop.f32.mrf.mxu0
        %v2110 = vadd.f32 0.0, %v2109
        %v2111 = vpop.f32.mrf.mxu0
        %2112 = vdwg.mxu0
        %2113 = vmatpush.bf16.msra.mxu0 %v2051
        %2114 = vmatpush.bf16.msra.mxu0 %v2050
        %2115 = vmatpush.bf16.msra.mxu0 %v2049
        %2116 = vmatpush.bf16.msra.mxu0 %v2048
        %2117 = vmatpush.bf16.msra.mxu0 %v2047
        %2118 = vmatpush.bf16.msra.mxu0 %v2046
        %2119 = vmatpush.bf16.msra.mxu0 %v2045
        %2120 = vmatpush.bf16.msra.mxu0 %v2044
        %2121 = vmatmul.bf16.gmra.mxu0 %v1841
        %v2122 = vpop.f32.mrf.mxu0
        %v2123 = vadd.f32 %v2110, %v2122
        %v2124 = vpop.f32.mrf.mxu0
        %2125 = vdwg.mxu0
        %2126 = vmatpush.bf16.msra.mxu0 %v2059
        %2127 = vmatpush.bf16.msra.mxu0 %v2058
        %2128 = vmatpush.bf16.msra.mxu0 %v2057
        %2129 = vmatpush.bf16.msra.mxu0 %v2056
        %2130 = vmatpush.bf16.msra.mxu0 %v2055
        %2131 = vmatpush.bf16.msra.mxu0 %v2054
        %2132 = vmatpush.bf16.msra.mxu0 %v2053
        %2133 = vmatpush.bf16.msra.mxu0 %v2052
        %2134 = vmatmul.bf16.gmra.mxu0 %v1842
        %v2135 = vpop.f32.mrf.mxu0
        %v2136 = vadd.f32 %v2123, %v2135
        %v2137 = vpop.f32.mrf.mxu0
        %2138 = vdwg.mxu0
        %2139 = vmatpush.bf16.msra.mxu0 %v2067
        %2140 = vmatpush.bf16.msra.mxu0 %v2066
        %2141 = vmatpush.bf16.msra.mxu0 %v2065
        %2142 = vmatpush.bf16.msra.mxu0 %v2064
        %2143 = vmatpush.bf16.msra.mxu0 %v2063
        %2144 = vmatpush.bf16.msra.mxu0 %v2062
        %2145 = vmatpush.bf16.msra.mxu0 %v2061
        %2146 = vmatpush.bf16.msra.mxu0 %v2060
        %2147 = vmatmul.bf16.gmra.mxu0 %v1843
        %v2148 = vpop.f32.mrf.mxu0
        %v2149 = vadd.f32 %v2136, %v2148
        %v2150 = vpop.f32.mrf.mxu0
        %2151 = vdwg.mxu0
        %2152 = vst [vmem:[%s312] sm:$0xff] %v2149
        %s2153 = sand.u32 %s186, 1
        %s2154 = scalar_lea.sflag [#allocation3], %s2153
        %s2155 = sand.u32 %s186, 1
        %s2156 = smul.addr %s2155, 32
        %s2157 = scalar_lea.vmem [#allocation2], %s2156
        %s2158 = sand.u32 %s212, 1
        %s2159 = scalar_lea.sflag [#allocation5], %s2158
        %s2160 = sand.u32 %s212, 1
        %s2161 = smul.addr %s2160, 8
        %s2162 = scalar_lea.vmem [#allocation4], %s2161
        // Predicated region
        $region49: #{simplevit_forward.1} parent=47 // pred_check
          %p2163 = pneg %p196
        $region50: #{simplevit_forward.1} parent=47 // pred_check_branch
          %2165 = sbr.rel (%p2163) target = $region52
        $region51: #{simplevit_forward.1} parent=47 // pred_region
          %2167 = vsyncadd %s2154, 0
          %s2168 = smul.addr %s26, 4
          %s2169 = smul.addr %s2168, 8
          %s2170 = scalar_lea.hbm %s7, %s2169
          %s2172 = sshll.u32 %s2157, 4
          %s2173 = int_to_ptr.vmem [resolvable:$true] %s2172
          %s2174 = sshll.u32 %s2170, 4
          %s2175 = int_to_ptr.hbm [resolvable:$true] %s2174
          %2177 = dma.vmem_to_hbm [thread:$0]  %s2173, 512, %s2175, %s2154
        $region52: #{simplevit_forward.1} parent=47 // pred_fallthru
          _
        // Predicated region
        $region53: #{simplevit_forward.1} parent=47 // pred_check
          %p2178 = pneg %p222
        $region54: #{simplevit_forward.1} parent=47 // pred_check_branch
          %2180 = sbr.rel (%p2178) target = $region56
        $region55: #{simplevit_forward.1} parent=47 // pred_region
          %2182 = vsyncadd %s2159, 0
          %s2183 = smul.addr %s26, 8
          %s2184 = scalar_lea.hbm %s8, %s2183
          %s2186 = sshll.u32 %s2162, 4
          %s2187 = int_to_ptr.vmem [resolvable:$true] %s2186
          %s2188 = sshll.u32 %s2184, 4
          %s2189 = int_to_ptr.hbm [resolvable:$true] %s2188
          %2191 = dma.vmem_to_hbm [thread:$0]  %s2187, 128, %s2189, %s2159
        $region56: #{simplevit_forward.1} parent=47 // pred_fallthru
          _
      $region48: #{simplevit_forward.1} parent=5 // pred_fallthru
        _
      %p2192 = scmp.le.s32.totalorder 2, %s21
      // Predicated region
      $region57: #{simplevit_forward.1} parent=5 // pred_check
        %p2193 = pneg %p2192
      $region58: #{simplevit_forward.1} parent=5 // pred_check_branch
        %2195 = sbr.rel (%p2193) target = $region60
      $region59: #{simplevit_forward.1} parent=5 // pred_region
        %s2196 = ssub.s32 %s21, 2
        // Predicated region
        $region61: #{simplevit_forward.1} parent=59 // pred_check
          %p2197 = pneg %p202
        $region62: #{simplevit_forward.1} parent=59 // pred_check_branch
          %2199 = sbr.rel (%p2197) target = $region64
        $region63: #{simplevit_forward.1} parent=59 // pred_region
          %s2200 = sand.u32 %s187, 1
          %s2201 = scalar_lea.sflag [#allocation3], %s2200
          %s2202 = sand.u32 %s187, 1
          %s2203 = smul.addr %s2202, 32
          %s2204 = scalar_lea.vmem [#allocation2], %s2203
          %2206 = dma.done %s2201, 512
        $region64: #{simplevit_forward.1} parent=59 // pred_fallthru
          _
        // Predicated region
        $region65: #{simplevit_forward.1} parent=59 // pred_check
          %p2207 = pneg %p228
        $region66: #{simplevit_forward.1} parent=59 // pred_check_branch
          %2209 = sbr.rel (%p2207) target = $region68
        $region67: #{simplevit_forward.1} parent=59 // pred_region
          %s2210 = sand.u32 %s213, 1
          %s2211 = scalar_lea.sflag [#allocation5], %s2210
          %s2212 = sand.u32 %s213, 1
          %s2213 = smul.addr %s2212, 8
          %s2214 = scalar_lea.vmem [#allocation4], %s2213
          %2216 = dma.done %s2211, 128
        $region68: #{simplevit_forward.1} parent=59 // pred_fallthru
          _
      $region60: #{simplevit_forward.1} parent=5 // pred_fallthru
        _
    $region6: #{simplevit_forward.1} parent=1 // loop_footer
      %s25 = sadd.s32 1, %s21
    $region7: #{simplevit_forward.1} parent=1 // loop_footer_branch
      %20 = sbr.rel target = $region3
    $region8: #{simplevit_forward.1} parent=1 // loop_exit
      _
    %2217 = vsyncpa [#allocation3], 1
    %s2218 = scalar_lea.sflag [#allocation3], 1
    %2219 = vsyncpa %s2218, 1
    %2220 = vsyncpa [#allocation5], 1
    %s2221 = scalar_lea.sflag [#allocation5], 1
    %2222 = vsyncpa %s2221, 1

</llo_original>
